<compile_context>
chip_gen: v5e
topology: v5e:2x2
jax: 0.10.0
libtpu: 0.0.40
codegen_flags: <defaults>
</compile_context>

<pallas_src>
import functools
import math

import jax
import jax.numpy as jnp
from jax.experimental import pallas as pl
from jax.experimental.pallas import tpu as pltpu

VMEM_SPEC = pl.BlockSpec(memory_space=pltpu.MemorySpace.VMEM)
PAD_N = 128            # lane-dense padding for the tiny (2- and 98-wide) head outputs
LN_EPS = 1e-12


# ----------------------------- helpers ------------------------------------- #

def _vec_slot_names(num_layers):
    """Ordering of the packed bias/LN vector slots (one 128-lane-aligned row each)."""
    names = ["emb_ln_g", "emb_ln_b"]
    for l in range(num_layers):
        names += [f"bqkv{l}", f"bao{l}", f"ln1_g{l}", f"ln1_b{l}",
                  f"bi{l}", f"bo2{l}", f"ln2_g{l}", f"ln2_b{l}"]
    names += ["subj_b", "dobj_b", "dsub_w0", "dsub_w1", "dsub_b"]
    return names


def _gelu(x):
    # TODO(synk): tanh-approx GELU; PyTorch nn.GELU defaults to exact erf (<~1e-3 delta).
    c = math.sqrt(2.0 / math.pi)
    return 0.5 * x * (1.0 + jnp.tanh(c * (x + 0.044715 * x * x * x)))


def _layer_norm(h, g, b, eps):
    mu = jnp.mean(h, axis=-1, keepdims=True)
    var = jnp.mean(jnp.square(h - mu), axis=-1, keepdims=True)
    return (h - mu) * jax.lax.rsqrt(var + eps) * g + b


# ----------------------------- the fused kernel ----------------------------- #

def _object_model_kernel(x_ref, mb_ref, sp_ref, vec_ref,
                         wqkv_ref, wao_ref, wi_ref, wo2_ref, wheads_ref,
                         subj_ref, obj_ref,
                         *, B, S, H, I, L, num_heads, slots, eps):
    nh = num_heads
    hd = H // nh
    scale = 1.0 / math.sqrt(hd)

    vecs = vec_ref[...]                           # (n_slots, slot_w) f32, one load

    def vec(name, width):
        i = slots[name]
        return vecs[i:i + 1, :width]              # (1, width), static slice

    # ---- embedding LayerNorm (fused; no dedicated launch) ----
    x = _layer_norm(x_ref[...], vec("emb_ln_g", H), vec("emb_ln_b", H), eps)

    # Additive attention-mask bias, tiled once to the head-major (nh*B) batch axis.
    mb = mb_ref[...]                              # (B, 1, S)
    mb_hb = jnp.concatenate([mb] * nh, axis=0)    # (nh*B, 1, S), loop-invariant

    # ---- encoder layers: static unroll, every activation stays in VMEM/vregs ----
    for l in range(L):
        xb = x.astype(jnp.bfloat16)
        # Fused Q/K/V projection, N = 3H; columns laid out per head: [q_h | k_h | v_h].
        qkv = (jnp.dot(xb, wqkv_ref[l], preferred_element_type=jnp.float32)
               + vec(f"bqkv{l}", 3 * H))          # (B*S, 3H) f32

        # One contiguous 3*hd lane window per head, stacked on a head-major batch axis.
        qkv_h = jnp.concatenate(
            [qkv[:, h * 3 * hd:(h + 1) * 3 * hd].reshape(B, S, 3 * hd)
             for h in range(nh)], axis=0)         # (nh*B, S, 3hd)
        q = qkv_h[:, :, 0 * hd:1 * hd].astype(jnp.bfloat16)
        k = qkv_h[:, :, 1 * hd:2 * hd].astype(jnp.bfloat16)
        v = qkv_h[:, :, 2 * hd:3 * hd].astype(jnp.bfloat16)

        # Attention batched over the fused (nh*B) axis: one score einsum, one softmax,
        # one context einsum for all heads (no per-head compute unroll).
        s = jnp.einsum("bqd,bkd->bqk", q, k,
                       preferred_element_type=jnp.float32) * scale   # (nh*B, S, S)
        s = s + mb_hb
        s = s - jnp.max(s, axis=-1, keepdims=True)
        p = jnp.exp(s)
        p = p / jnp.sum(p, axis=-1, keepdims=True)                   # exact softmax norm
        ctx = jnp.einsum("bqk,bkd->bqd", p.astype(jnp.bfloat16), v,
                         preferred_element_type=jnp.float32)         # (nh*B, S, hd)

        # Re-concatenate heads on the lane axis -> ONE K=H output projection matmul.
        ctx_full = jnp.concatenate(
            [ctx[h * B:(h + 1) * B].reshape(B * S, hd) for h in range(nh)], axis=-1)
        attn = (jnp.dot(ctx_full.astype(jnp.bfloat16), wao_ref[l],
                        preferred_element_type=jnp.float32) + vec(f"bao{l}", H))

        # Residual + LayerNorm 1 (f32 statistics).
        h1 = _layer_norm(x + attn, vec(f"ln1_g{l}", H), vec(f"ln1_b{l}", H), eps)

        # FFN (GELU) + residual + LayerNorm 2.
        ff = (jnp.dot(h1.astype(jnp.bfloat16), wi_ref[l],
                      preferred_element_type=jnp.float32) + vec(f"bi{l}", I))
        ff = _gelu(ff)
        ff = (jnp.dot(ff.astype(jnp.bfloat16), wo2_ref[l],
                      preferred_element_type=jnp.float32) + vec(f"bo2{l}", H))
        x = _layer_norm(h1 + ff, vec(f"ln2_g{l}", H), vec(f"ln2_b{l}", H), eps)

    # ---- SubjectModel head: sigmoid(Linear(H -> 2)), padded to 128 lanes ----
    subj = (jnp.dot(x.astype(jnp.bfloat16), wheads_ref[:, :PAD_N],
                    preferred_element_type=jnp.float32) + vec("subj_b", PAD_N))
    subj_ref[...] = jax.nn.sigmoid(subj)

    # ---- ObjectModel head ----
    # denseSubject is (B,2)@(2,H): with K=2 use two VPU broadcast-FMAs (no MXU, no repeat),
    # then broadcast over the sequence axis inside the kernel.
    sp = sp_ref[...]                                                  # (B, 2)
    sp_h = (sp[:, 0:1] * vec("dsub_w0", H)
            + sp[:, 1:2] * vec("dsub_w1", H)
            + vec("dsub_b", H))                                       # (B, H)
    h_obj = (x.reshape(B, S, H) + sp_h[:, None, :]).reshape(B * S, H)
    obj = (jnp.dot(h_obj.astype(jnp.bfloat16), wheads_ref[:, PAD_N:],
                   preferred_element_type=jnp.float32) + vec("dobj_b", PAD_N))
    obj = jax.nn.sigmoid(obj)
    t = obj * obj
    obj_ref[...] = t * t                                              # torch.pow(., 4)


# ----------------------------- forward wrapper ------------------------------ #

def object_model_forward(params, input_ids, subject_position, attention_mask, *, num_heads):
    B, S = input_ids.shape
    p = params
    L, H, _ = p["wqkv"].shape
    I = p["wi"].shape[2]

    # TODO(synk): embedding gathers (word/pos/token-type lookup) are data-dependent
    # indexing and stay in plain JAX; token_type_ids assumed all-zero.
    x = (p["word_emb"][input_ids]
         + p["pos_emb"][:S][None, :, :]
         + p["type_emb"][0][None, None, :]).reshape(B * S, H)
    mb = ((1.0 - attention_mask.astype(jnp.float32)) * -10000.0).reshape(B, 1, S)

    slots = {n: i for i, n in enumerate(_vec_slot_names(L))}
    kern = functools.partial(_object_model_kernel, B=B, S=S, H=H, I=I, L=L,
                             num_heads=num_heads, slots=slots, eps=LN_EPS)

    subj_pad, obj_pad = pl.pallas_call(
        kern,
        out_shape=(jax.ShapeDtypeStruct((B * S, PAD_N), jnp.float32),
                   jax.ShapeDtypeStruct((B * S, PAD_N), jnp.float32)),
        in_specs=[VMEM_SPEC] * 9,
        out_specs=(VMEM_SPEC, VMEM_SPEC),
    )(x, mb, subject_position, p["vecs"],
      p["wqkv"], p["wao"], p["wi"], p["wo2"], p["wheads"])

    subject_out = subj_pad[:, :2].reshape(B, S, 2)
    object_out = obj_pad[:, :49 * 2].reshape(B, S, 49, 2)
    return subject_out, object_out


# ----------------------------- parameter init ------------------------------- #

def init_params(key, vocab=100, max_pos=32, hidden=32, intermediate=64,
                num_layers=2, num_heads=2):
    keys = iter(jax.random.split(key, 256))
    H, I, L = hidden, intermediate, num_layers
    hd = H // num_heads

    def w(shape, scale=0.02):
        return jax.random.normal(next(keys), shape, jnp.float32) * scale

    p = dict(
        word_emb=w((vocab, H)),
        pos_emb=w((max_pos, H)),
        type_emb=w((2, H)),
    )

    vec_vals = dict(
        emb_ln_g=jnp.ones((H,), jnp.float32),
        emb_ln_b=jnp.zeros((H,), jnp.float32),
    )

    wqkv_l, wao_l, wi_l, wo2_l = [], [], [], []
    for l in range(L):
        wq, wk, wv = w((H, H)), w((H, H)), w((H, H))
        bq, bk, bv = w((H,)), w((H,)), w((H,))
        # Per-head-contiguous fused QKV layout: columns [q_h | k_h | v_h] for each head,
        # so the kernel takes one contiguous 3*hd lane window per head.
        wblk, bblk = [], []
        for h in range(num_heads):
            sl = slice(h * hd, (h + 1) * hd)
            wblk += [wq[:, sl], wk[:, sl], wv[:, sl]]
            bblk += [bq[sl], bk[sl], bv[sl]]
        wqkv_l.append(jnp.concatenate(wblk, axis=1).astype(jnp.bfloat16))
        vec_vals[f"bqkv{l}"] = jnp.concatenate(bblk)

        wao_l.append(w((H, H)).astype(jnp.bfloat16))
        vec_vals[f"bao{l}"] = w((H,))
        vec_vals[f"ln1_g{l}"] = jnp.ones((H,), jnp.float32)
        vec_vals[f"ln1_b{l}"] = jnp.zeros((H,), jnp.float32)
        wi_l.append(w((H, I)).astype(jnp.bfloat16))
        vec_vals[f"bi{l}"] = w((I,))
        wo2_l.append(w((I, H)).astype(jnp.bfloat16))
        vec_vals[f"bo2{l}"] = w((H,))
        vec_vals[f"ln2_g{l}"] = jnp.ones((H,), jnp.float32)
        vec_vals[f"ln2_b{l}"] = jnp.zeros((H,), jnp.float32)

    p["wqkv"] = jnp.stack(wqkv_l)       # (L, H, 3H) bf16
    p["wao"] = jnp.stack(wao_l)         # (L, H, H)  bf16
    p["wi"] = jnp.stack(wi_l)           # (L, H, I)  bf16
    p["wo2"] = jnp.stack(wo2_l)         # (L, I, H)  bf16

    # Heads: SubjectModel.dense (H->2) and ObjectModel.denseobject (H->98), each padded
    # to 128 output lanes and fused into a single (H, 256) bf16 weight (one DMA).
    subj_w = jnp.pad(w((H, 2)), ((0, 0), (0, PAD_N - 2)))
    dobj_w = jnp.pad(w((H, 49 * 2)), ((0, 0), (0, PAD_N - 49 * 2)))
    p["wheads"] = jnp.concatenate([subj_w, dobj_w], axis=1).astype(jnp.bfloat16)
    vec_vals["subj_b"] = w((2,))
    vec_vals["dobj_b"] = w((49 * 2,))
    dsub_w = w((2, H))                  # ObjectModel.denseSubject: used as VPU FMAs (K=2)
    vec_vals["dsub_w0"] = dsub_w[0]
    vec_vals["dsub_w1"] = dsub_w[1]
    vec_vals["dsub_b"] = w((H,))

    # Pack every bias / LN vector (and the 2xH denseSubject rows) into ONE 2-D array,
    # one 128-lane-aligned slot per vector -> a single DMA instead of ~20 tiny ones.
    names = _vec_slot_names(L)
    max_w = max(vec_vals[n].shape[0] for n in names)
    slot_w = max(PAD_N, (max_w + 127) // 128 * 128)
    p["vecs"] = jnp.stack(
        [jnp.pad(vec_vals[n].astype(jnp.float32),
                 (0, slot_w - vec_vals[n].shape[0])) for n in names], axis=0)
    return p


# ----------------------------------- main ----------------------------------- #

if __name__ == "__main__":
    B, S, HIDDEN, NUM_HEADS, VOCAB = 2, 8, 32, 2, 100

    params = init_params(jax.random.PRNGKey(42), vocab=VOCAB, hidden=HIDDEN,
                         num_heads=NUM_HEADS)

    key = jax.random.PRNGKey(0)
    k_ids, k_sub = jax.random.split(key)
    input_ids = jax.random.randint(k_ids, (B, S), 0, VOCAB, dtype=jnp.int32)
    attention_mask = jnp.ones((B, S), dtype=jnp.int32).at[1, S - 2:].set(0)
    subject_position = jax.random.normal(k_sub, (B, 2), dtype=jnp.float32)

    fwd = jax.jit(object_model_forward, static_argnames=("num_heads",))
    subject_out, object_out = fwd(params, input_ids, subject_position, attention_mask,
                                  num_heads=NUM_HEADS)
    jax.block_until_ready((subject_out, object_out))

    assert subject_out.shape == (B, S, 2)
    assert object_out.shape == (B, S, 49, 2)
    assert bool(jnp.all(jnp.isfinite(subject_out))) and bool(jnp.all(jnp.isfinite(object_out)))
    assert bool(jnp.all((subject_out >= 0) & (subject_out <= 1)))
    assert bool(jnp.all((object_out >= 0) & (object_out <= 1)))
    print("KERNEL_OK")
</pallas_src>

<mosaic_0001>
module attributes {stable_mosaic.version = 11 : i64} {
  func.func @_object_model_kernel(%arg0: memref<16x32xf32, #tpu.memory_space<vmem>>, %arg1: memref<2x1x8xf32, #tpu.memory_space<vmem>>, %arg2: memref<2x2xf32, #tpu.memory_space<vmem>>, %arg3: memref<23x128xf32, #tpu.memory_space<vmem>>, %arg4: memref<2x32x96xbf16, #tpu.memory_space<vmem>>, %arg5: memref<2x32x32xbf16, #tpu.memory_space<vmem>>, %arg6: memref<2x32x64xbf16, #tpu.memory_space<vmem>>, %arg7: memref<2x64x32xbf16, #tpu.memory_space<vmem>>, %arg8: memref<32x256xbf16, #tpu.memory_space<vmem>>, %arg9: memref<16x128xf32, #tpu.memory_space<vmem>>, %arg10: memref<16x128xf32, #tpu.memory_space<vmem>>) attributes {dimension_semantics = [], scalar_prefetch = 0 : i64, scratch_operands = 0 : i64, tpu.core_type = #tpu.core_type<tc>} {
    %c0 = arith.constant 0 : index
    %c0_0 = arith.constant 0 : index
    %0 = vector.load %arg3[%c0, %c0_0] : memref<23x128xf32, #tpu.memory_space<vmem>>, vector<23x128xf32>
    %c0_1 = arith.constant 0 : index
    %c0_2 = arith.constant 0 : index
    %1 = vector.load %arg0[%c0_1, %c0_2] : memref<16x32xf32, #tpu.memory_space<vmem>>, vector<16x32xf32>
    %2 = vector.extract_strided_slice %0 {offsets = [0, 0], sizes = [1, 32], strides = [1, 1]} : vector<23x128xf32> to vector<1x32xf32>
    %3 = vector.extract_strided_slice %0 {offsets = [1, 0], sizes = [1, 32], strides = [1, 1]} : vector<23x128xf32> to vector<1x32xf32>
    %cst = arith.constant dense<0.000000e+00> : vector<16xf32>
    %4 = vector.multi_reduction <add>, %1, %cst [1] : vector<16x32xf32> to vector<16xf32>
    %5 = vector.shape_cast %4 : vector<16xf32> to vector<16x1xf32>
    %cst_3 = arith.constant 3.200000e+01 : f32
    %6 = vector.broadcast %cst_3 : f32 to vector<16x1xf32>
    %7 = arith.divf %5, %6 : vector<16x1xf32>
    %8 = vector.broadcast %7 : vector<16x1xf32> to vector<16x32xf32>
    %9 = arith.subf %1, %8 : vector<16x32xf32>
    %10 = arith.mulf %9, %9 : vector<16x32xf32>
    %cst_4 = arith.constant dense<0.000000e+00> : vector<16xf32>
    %11 = vector.multi_reduction <add>, %10, %cst_4 [1] : vector<16x32xf32> to vector<16xf32>
    %12 = vector.shape_cast %11 : vector<16xf32> to vector<16x1xf32>
    %cst_5 = arith.constant 3.200000e+01 : f32
    %13 = vector.broadcast %cst_5 : f32 to vector<16x1xf32>
    %14 = arith.divf %12, %13 : vector<16x1xf32>
    %15 = vector.broadcast %7 : vector<16x1xf32> to vector<16x32xf32>
    %16 = arith.subf %1, %15 : vector<16x32xf32>
    %cst_6 = arith.constant 9.99999996E-13 : f32
    %17 = vector.broadcast %cst_6 : f32 to vector<16x1xf32>
    %18 = arith.addf %14, %17 : vector<16x1xf32>
    %19 = math.rsqrt %18 : vector<16x1xf32>
    %20 = vector.broadcast %19 : vector<16x1xf32> to vector<16x32xf32>
    %21 = arith.mulf %16, %20 : vector<16x32xf32>
    %22 = vector.broadcast %2 : vector<1x32xf32> to vector<16x32xf32>
    %23 = arith.mulf %21, %22 : vector<16x32xf32>
    %24 = vector.broadcast %3 : vector<1x32xf32> to vector<16x32xf32>
    %25 = arith.addf %23, %24 : vector<16x32xf32>
    %c0_7 = arith.constant 0 : index
    %c0_8 = arith.constant 0 : index
    %c0_9 = arith.constant 0 : index
    %26 = vector.load %arg1[%c0_7, %c0_8, %c0_9] : memref<2x1x8xf32, #tpu.memory_space<vmem>>, vector<2x1x8xf32>
    %27 = tpu.concatenate %26, %26 in 0 : vector<2x1x8xf32>, vector<2x1x8xf32> -> vector<4x1x8xf32>
    %28 = arith.truncf %25 : vector<16x32xf32> to vector<16x32xbf16>
    %c0_10 = arith.constant 0 : index
    %c0_11 = arith.constant 0 : index
    %c0_12 = arith.constant 0 : index
    %29 = vector.load %arg4[%c0_10, %c0_11, %c0_12] : memref<2x32x96xbf16, #tpu.memory_space<vmem>>, vector<1x32x96xbf16>
    %30 = vector.shape_cast %29 : vector<1x32x96xbf16> to vector<32x96xbf16>
    %cst_13 = arith.constant dense<0.000000e+00> : vector<16x96xf32>
    %31 = tpu.matmul %28, %30, %cst_13 {dimension_numbers = #tpu.dot_dimension_numbers<[1], [0], [0], [1], [0, 0, 1, 1], [], []>} : vector<16x32xbf16>, vector<32x96xbf16>, vector<16x96xf32> -> vector<16x96xf32>
    %32 = vector.extract_strided_slice %0 {offsets = [2, 0], sizes = [1, 96], strides = [1, 1]} : vector<23x128xf32> to vector<1x96xf32>
    %33 = vector.broadcast %32 : vector<1x96xf32> to vector<16x96xf32>
    %34 = arith.addf %31, %33 : vector<16x96xf32>
    %35 = vector.extract_strided_slice %34 {offsets = [0, 0], sizes = [16, 48], strides = [1, 1]} : vector<16x96xf32> to vector<16x48xf32>
    %36 = vector.shape_cast %35 : vector<16x48xf32> to vector<2x8x48xf32>
    %37 = vector.extract_strided_slice %34 {offsets = [0, 48], sizes = [16, 48], strides = [1, 1]} : vector<16x96xf32> to vector<16x48xf32>
    %38 = vector.shape_cast %37 : vector<16x48xf32> to vector<2x8x48xf32>
    %39 = tpu.concatenate %36, %38 in 0 : vector<2x8x48xf32>, vector<2x8x48xf32> -> vector<4x8x48xf32>
    %40 = vector.extract_strided_slice %39 {offsets = [0, 0, 0], sizes = [4, 8, 16], strides = [1, 1, 1]} : vector<4x8x48xf32> to vector<4x8x16xf32>
    %41 = arith.truncf %40 : vector<4x8x16xf32> to vector<4x8x16xbf16>
    %42 = vector.extract_strided_slice %39 {offsets = [0, 0, 16], sizes = [4, 8, 16], strides = [1, 1, 1]} : vector<4x8x48xf32> to vector<4x8x16xf32>
    %43 = arith.truncf %42 : vector<4x8x16xf32> to vector<4x8x16xbf16>
    %44 = vector.extract_strided_slice %39 {offsets = [0, 0, 32], sizes = [4, 8, 16], strides = [1, 1, 1]} : vector<4x8x48xf32> to vector<4x8x16xf32>
    %45 = arith.truncf %44 : vector<4x8x16xf32> to vector<4x8x16xbf16>
    "tpu.trace_start"() <{level = 10 : i32, message = "bqd,bkd->bqk"}> : () -> ()
    %cst_14 = arith.constant dense<0.000000e+00> : vector<4x8x8xf32>
    %46 = tpu.matmul %41, %43, %cst_14 {dimension_numbers = #tpu.dot_dimension_numbers<[2], [2], [1], [1], [0, 0, 0, 1, 1, 1], [0], [0]>} : vector<4x8x16xbf16>, vector<4x8x16xbf16>, vector<4x8x8xf32> -> vector<4x8x8xf32>
    "tpu.trace_stop"() : () -> ()
    %cst_15 = arith.constant 2.500000e-01 : f32
    %47 = vector.broadcast %cst_15 : f32 to vector<4x8x8xf32>
    %48 = arith.mulf %46, %47 : vector<4x8x8xf32>
    %49 = vector.broadcast %27 : vector<4x1x8xf32> to vector<4x8x8xf32>
    %50 = arith.addf %48, %49 : vector<4x8x8xf32>
    %cst_16 = arith.constant dense<0xFF800000> : vector<4x8xf32>
    %51 = vector.multi_reduction <maximumf>, %50, %cst_16 [2] : vector<4x8x8xf32> to vector<4x8xf32>
    %52 = vector.shape_cast %51 : vector<4x8xf32> to vector<4x8x1xf32>
    %53 = vector.broadcast %52 : vector<4x8x1xf32> to vector<4x8x8xf32>
    %54 = arith.subf %50, %53 : vector<4x8x8xf32>
    %55 = math.exp %54 : vector<4x8x8xf32>
    %cst_17 = arith.constant dense<0.000000e+00> : vector<4x8xf32>
    %56 = vector.multi_reduction <add>, %55, %cst_17 [2] : vector<4x8x8xf32> to vector<4x8xf32>
    %57 = vector.shape_cast %56 : vector<4x8xf32> to vector<4x8x1xf32>
    %58 = vector.broadcast %57 : vector<4x8x1xf32> to vector<4x8x8xf32>
    %59 = arith.divf %55, %58 : vector<4x8x8xf32>
    %60 = arith.truncf %59 : vector<4x8x8xf32> to vector<4x8x8xbf16>
    "tpu.trace_start"() <{level = 10 : i32, message = "bqk,bkd->bqd"}> : () -> ()
    %cst_18 = arith.constant dense<0.000000e+00> : vector<4x8x16xf32>
    %61 = tpu.matmul %60, %45, %cst_18 {dimension_numbers = #tpu.dot_dimension_numbers<[2], [1], [1], [2], [0, 0, 0, 1, 1, 2], [0], [0]>} : vector<4x8x8xbf16>, vector<4x8x16xbf16>, vector<4x8x16xf32> -> vector<4x8x16xf32>
    "tpu.trace_stop"() : () -> ()
    %62 = vector.extract_strided_slice %61 {offsets = [0, 0, 0], sizes = [2, 8, 16], strides = [1, 1, 1]} : vector<4x8x16xf32> to vector<2x8x16xf32>
    %63 = vector.shape_cast %62 : vector<2x8x16xf32> to vector<16x16xf32>
    %64 = vector.extract_strided_slice %61 {offsets = [2, 0, 0], sizes = [2, 8, 16], strides = [1, 1, 1]} : vector<4x8x16xf32> to vector<2x8x16xf32>
    %65 = vector.shape_cast %64 : vector<2x8x16xf32> to vector<16x16xf32>
    %66 = tpu.concatenate %63, %65 in 1 : vector<16x16xf32>, vector<16x16xf32> -> vector<16x32xf32>
    %67 = arith.truncf %66 : vector<16x32xf32> to vector<16x32xbf16>
    %c0_19 = arith.constant 0 : index
    %c0_20 = arith.constant 0 : index
    %c0_21 = arith.constant 0 : index
    %68 = vector.load %arg5[%c0_19, %c0_20, %c0_21] : memref<2x32x32xbf16, #tpu.memory_space<vmem>>, vector<1x32x32xbf16>
    %69 = vector.shape_cast %68 : vector<1x32x32xbf16> to vector<32x32xbf16>
    %cst_22 = arith.constant dense<0.000000e+00> : vector<16x32xf32>
    %70 = tpu.matmul %67, %69, %cst_22 {dimension_numbers = #tpu.dot_dimension_numbers<[1], [0], [0], [1], [0, 0, 1, 1], [], []>} : vector<16x32xbf16>, vector<32x32xbf16>, vector<16x32xf32> -> vector<16x32xf32>
    %71 = vector.extract_strided_slice %0 {offsets = [3, 0], sizes = [1, 32], strides = [1, 1]} : vector<23x128xf32> to vector<1x32xf32>
    %72 = vector.broadcast %71 : vector<1x32xf32> to vector<16x32xf32>
    %73 = arith.addf %70, %72 : vector<16x32xf32>
    %74 = arith.addf %25, %73 : vector<16x32xf32>
    %75 = vector.extract_strided_slice %0 {offsets = [4, 0], sizes = [1, 32], strides = [1, 1]} : vector<23x128xf32> to vector<1x32xf32>
    %76 = vector.extract_strided_slice %0 {offsets = [5, 0], sizes = [1, 32], strides = [1, 1]} : vector<23x128xf32> to vector<1x32xf32>
    %cst_23 = arith.constant dense<0.000000e+00> : vector<16xf32>
    %77 = vector.multi_reduction <add>, %74, %cst_23 [1] : vector<16x32xf32> to vector<16xf32>
    %78 = vector.shape_cast %77 : vector<16xf32> to vector<16x1xf32>
    %cst_24 = arith.constant 3.200000e+01 : f32
    %79 = vector.broadcast %cst_24 : f32 to vector<16x1xf32>
    %80 = arith.divf %78, %79 : vector<16x1xf32>
    %81 = vector.broadcast %80 : vector<16x1xf32> to vector<16x32xf32>
    %82 = arith.subf %74, %81 : vector<16x32xf32>
    %83 = arith.mulf %82, %82 : vector<16x32xf32>
    %cst_25 = arith.constant dense<0.000000e+00> : vector<16xf32>
    %84 = vector.multi_reduction <add>, %83, %cst_25 [1] : vector<16x32xf32> to vector<16xf32>
    %85 = vector.shape_cast %84 : vector<16xf32> to vector<16x1xf32>
    %cst_26 = arith.constant 3.200000e+01 : f32
    %86 = vector.broadcast %cst_26 : f32 to vector<16x1xf32>
    %87 = arith.divf %85, %86 : vector<16x1xf32>
    %88 = vector.broadcast %80 : vector<16x1xf32> to vector<16x32xf32>
    %89 = arith.subf %74, %88 : vector<16x32xf32>
    %cst_27 = arith.constant 9.99999996E-13 : f32
    %90 = vector.broadcast %cst_27 : f32 to vector<16x1xf32>
    %91 = arith.addf %87, %90 : vector<16x1xf32>
    %92 = math.rsqrt %91 : vector<16x1xf32>
    %93 = vector.broadcast %92 : vector<16x1xf32> to vector<16x32xf32>
    %94 = arith.mulf %89, %93 : vector<16x32xf32>
    %95 = vector.broadcast %75 : vector<1x32xf32> to vector<16x32xf32>
    %96 = arith.mulf %94, %95 : vector<16x32xf32>
    %97 = vector.broadcast %76 : vector<1x32xf32> to vector<16x32xf32>
    %98 = arith.addf %96, %97 : vector<16x32xf32>
    %99 = arith.truncf %98 : vector<16x32xf32> to vector<16x32xbf16>
    %c0_28 = arith.constant 0 : index
    %c0_29 = arith.constant 0 : index
    %c0_30 = arith.constant 0 : index
    %100 = vector.load %arg6[%c0_28, %c0_29, %c0_30] : memref<2x32x64xbf16, #tpu.memory_space<vmem>>, vector<1x32x64xbf16>
    %101 = vector.shape_cast %100 : vector<1x32x64xbf16> to vector<32x64xbf16>
    %cst_31 = arith.constant dense<0.000000e+00> : vector<16x64xf32>
    %102 = tpu.matmul %99, %101, %cst_31 {dimension_numbers = #tpu.dot_dimension_numbers<[1], [0], [0], [1], [0, 0, 1, 1], [], []>} : vector<16x32xbf16>, vector<32x64xbf16>, vector<16x64xf32> -> vector<16x64xf32>
    %103 = vector.extract_strided_slice %0 {offsets = [6, 0], sizes = [1, 64], strides = [1, 1]} : vector<23x128xf32> to vector<1x64xf32>
    %104 = vector.broadcast %103 : vector<1x64xf32> to vector<16x64xf32>
    %105 = arith.addf %102, %104 : vector<16x64xf32>
    %cst_32 = arith.constant 5.000000e-01 : f32
    %106 = vector.broadcast %cst_32 : f32 to vector<16x64xf32>
    %107 = arith.mulf %106, %105 : vector<16x64xf32>
    %cst_33 = arith.constant 4.471500e-02 : f32
    %108 = vector.broadcast %cst_33 : f32 to vector<16x64xf32>
    %109 = arith.mulf %108, %105 : vector<16x64xf32>
    %110 = arith.mulf %109, %105 : vector<16x64xf32>
    %111 = arith.mulf %110, %105 : vector<16x64xf32>
    %112 = arith.addf %105, %111 : vector<16x64xf32>
    %cst_34 = arith.constant 0.797884583 : f32
    %113 = vector.broadcast %cst_34 : f32 to vector<16x64xf32>
    %114 = arith.mulf %113, %112 : vector<16x64xf32>
    %115 = math.tanh %114 : vector<16x64xf32>
    %cst_35 = arith.constant 1.000000e+00 : f32
    %116 = vector.broadcast %cst_35 : f32 to vector<16x64xf32>
    %117 = arith.addf %116, %115 : vector<16x64xf32>
    %118 = arith.mulf %107, %117 : vector<16x64xf32>
    %119 = arith.truncf %118 : vector<16x64xf32> to vector<16x64xbf16>
    %c0_36 = arith.constant 0 : index
    %c0_37 = arith.constant 0 : index
    %c0_38 = arith.constant 0 : index
    %120 = vector.load %arg7[%c0_36, %c0_37, %c0_38] : memref<2x64x32xbf16, #tpu.memory_space<vmem>>, vector<1x64x32xbf16>
    %121 = vector.shape_cast %120 : vector<1x64x32xbf16> to vector<64x32xbf16>
    %cst_39 = arith.constant dense<0.000000e+00> : vector<16x32xf32>
    %122 = tpu.matmul %119, %121, %cst_39 {dimension_numbers = #tpu.dot_dimension_numbers<[1], [0], [0], [1], [0, 0, 1, 1], [], []>} : vector<16x64xbf16>, vector<64x32xbf16>, vector<16x32xf32> -> vector<16x32xf32>
    %123 = vector.extract_strided_slice %0 {offsets = [7, 0], sizes = [1, 32], strides = [1, 1]} : vector<23x128xf32> to vector<1x32xf32>
    %124 = vector.broadcast %123 : vector<1x32xf32> to vector<16x32xf32>
    %125 = arith.addf %122, %124 : vector<16x32xf32>
    %126 = arith.addf %98, %125 : vector<16x32xf32>
    %127 = vector.extract_strided_slice %0 {offsets = [8, 0], sizes = [1, 32], strides = [1, 1]} : vector<23x128xf32> to vector<1x32xf32>
    %128 = vector.extract_strided_slice %0 {offsets = [9, 0], sizes = [1, 32], strides = [1, 1]} : vector<23x128xf32> to vector<1x32xf32>
    %cst_40 = arith.constant dense<0.000000e+00> : vector<16xf32>
    %129 = vector.multi_reduction <add>, %126, %cst_40 [1] : vector<16x32xf32> to vector<16xf32>
    %130 = vector.shape_cast %129 : vector<16xf32> to vector<16x1xf32>
    %cst_41 = arith.constant 3.200000e+01 : f32
    %131 = vector.broadcast %cst_41 : f32 to vector<16x1xf32>
    %132 = arith.divf %130, %131 : vector<16x1xf32>
    %133 = vector.broadcast %132 : vector<16x1xf32> to vector<16x32xf32>
    %134 = arith.subf %126, %133 : vector<16x32xf32>
    %135 = arith.mulf %134, %134 : vector<16x32xf32>
    %cst_42 = arith.constant dense<0.000000e+00> : vector<16xf32>
    %136 = vector.multi_reduction <add>, %135, %cst_42 [1] : vector<16x32xf32> to vector<16xf32>
    %137 = vector.shape_cast %136 : vector<16xf32> to vector<16x1xf32>
    %cst_43 = arith.constant 3.200000e+01 : f32
    %138 = vector.broadcast %cst_43 : f32 to vector<16x1xf32>
    %139 = arith.divf %137, %138 : vector<16x1xf32>
    %140 = vector.broadcast %132 : vector<16x1xf32> to vector<16x32xf32>
    %141 = arith.subf %126, %140 : vector<16x32xf32>
    %cst_44 = arith.constant 9.99999996E-13 : f32
    %142 = vector.broadcast %cst_44 : f32 to vector<16x1xf32>
    %143 = arith.addf %139, %142 : vector<16x1xf32>
    %144 = math.rsqrt %143 : vector<16x1xf32>
    %145 = vector.broadcast %144 : vector<16x1xf32> to vector<16x32xf32>
    %146 = arith.mulf %141, %145 : vector<16x32xf32>
    %147 = vector.broadcast %127 : vector<1x32xf32> to vector<16x32xf32>
    %148 = arith.mulf %146, %147 : vector<16x32xf32>
    %149 = vector.broadcast %128 : vector<1x32xf32> to vector<16x32xf32>
    %150 = arith.addf %148, %149 : vector<16x32xf32>
    %151 = arith.truncf %150 : vector<16x32xf32> to vector<16x32xbf16>
    %c1 = arith.constant 1 : index
    %c0_45 = arith.constant 0 : index
    %c0_46 = arith.constant 0 : index
    %152 = vector.load %arg4[%c1, %c0_45, %c0_46] : memref<2x32x96xbf16, #tpu.memory_space<vmem>>, vector<1x32x96xbf16>
    %153 = vector.shape_cast %152 : vector<1x32x96xbf16> to vector<32x96xbf16>
    %cst_47 = arith.constant dense<0.000000e+00> : vector<16x96xf32>
    %154 = tpu.matmul %151, %153, %cst_47 {dimension_numbers = #tpu.dot_dimension_numbers<[1], [0], [0], [1], [0, 0, 1, 1], [], []>} : vector<16x32xbf16>, vector<32x96xbf16>, vector<16x96xf32> -> vector<16x96xf32>
    %155 = vector.extract_strided_slice %0 {offsets = [10, 0], sizes = [1, 96], strides = [1, 1]} : vector<23x128xf32> to vector<1x96xf32>
    %156 = vector.broadcast %155 : vector<1x96xf32> to vector<16x96xf32>
    %157 = arith.addf %154, %156 : vector<16x96xf32>
    %158 = vector.extract_strided_slice %157 {offsets = [0, 0], sizes = [16, 48], strides = [1, 1]} : vector<16x96xf32> to vector<16x48xf32>
    %159 = vector.shape_cast %158 : vector<16x48xf32> to vector<2x8x48xf32>
    %160 = vector.extract_strided_slice %157 {offsets = [0, 48], sizes = [16, 48], strides = [1, 1]} : vector<16x96xf32> to vector<16x48xf32>
    %161 = vector.shape_cast %160 : vector<16x48xf32> to vector<2x8x48xf32>
    %162 = tpu.concatenate %159, %161 in 0 : vector<2x8x48xf32>, vector<2x8x48xf32> -> vector<4x8x48xf32>
    %163 = vector.extract_strided_slice %162 {offsets = [0, 0, 0], sizes = [4, 8, 16], strides = [1, 1, 1]} : vector<4x8x48xf32> to vector<4x8x16xf32>
    %164 = arith.truncf %163 : vector<4x8x16xf32> to vector<4x8x16xbf16>
    %165 = vector.extract_strided_slice %162 {offsets = [0, 0, 16], sizes = [4, 8, 16], strides = [1, 1, 1]} : vector<4x8x48xf32> to vector<4x8x16xf32>
    %166 = arith.truncf %165 : vector<4x8x16xf32> to vector<4x8x16xbf16>
    %167 = vector.extract_strided_slice %162 {offsets = [0, 0, 32], sizes = [4, 8, 16], strides = [1, 1, 1]} : vector<4x8x48xf32> to vector<4x8x16xf32>
    %168 = arith.truncf %167 : vector<4x8x16xf32> to vector<4x8x16xbf16>
    "tpu.trace_start"() <{level = 10 : i32, message = "bqd,bkd->bqk"}> : () -> ()
    %cst_48 = arith.constant dense<0.000000e+00> : vector<4x8x8xf32>
    %169 = tpu.matmul %164, %166, %cst_48 {dimension_numbers = #tpu.dot_dimension_numbers<[2], [2], [1], [1], [0, 0, 0, 1, 1, 1], [0], [0]>} : vector<4x8x16xbf16>, vector<4x8x16xbf16>, vector<4x8x8xf32> -> vector<4x8x8xf32>
    "tpu.trace_stop"() : () -> ()
    %cst_49 = arith.constant 2.500000e-01 : f32
    %170 = vector.broadcast %cst_49 : f32 to vector<4x8x8xf32>
    %171 = arith.mulf %169, %170 : vector<4x8x8xf32>
    %172 = vector.broadcast %27 : vector<4x1x8xf32> to vector<4x8x8xf32>
    %173 = arith.addf %171, %172 : vector<4x8x8xf32>
    %cst_50 = arith.constant dense<0xFF800000> : vector<4x8xf32>
    %174 = vector.multi_reduction <maximumf>, %173, %cst_50 [2] : vector<4x8x8xf32> to vector<4x8xf32>
    %175 = vector.shape_cast %174 : vector<4x8xf32> to vector<4x8x1xf32>
    %176 = vector.broadcast %175 : vector<4x8x1xf32> to vector<4x8x8xf32>
    %177 = arith.subf %173, %176 : vector<4x8x8xf32>
    %178 = math.exp %177 : vector<4x8x8xf32>
    %cst_51 = arith.constant dense<0.000000e+00> : vector<4x8xf32>
    %179 = vector.multi_reduction <add>, %178, %cst_51 [2] : vector<4x8x8xf32> to vector<4x8xf32>
    %180 = vector.shape_cast %179 : vector<4x8xf32> to vector<4x8x1xf32>
    %181 = vector.broadcast %180 : vector<4x8x1xf32> to vector<4x8x8xf32>
    %182 = arith.divf %178, %181 : vector<4x8x8xf32>
    %183 = arith.truncf %182 : vector<4x8x8xf32> to vector<4x8x8xbf16>
    "tpu.trace_start"() <{level = 10 : i32, message = "bqk,bkd->bqd"}> : () -> ()
    %cst_52 = arith.constant dense<0.000000e+00> : vector<4x8x16xf32>
    %184 = tpu.matmul %183, %168, %cst_52 {dimension_numbers = #tpu.dot_dimension_numbers<[2], [1], [1], [2], [0, 0, 0, 1, 1, 2], [0], [0]>} : vector<4x8x8xbf16>, vector<4x8x16xbf16>, vector<4x8x16xf32> -> vector<4x8x16xf32>
    "tpu.trace_stop"() : () -> ()
    %185 = vector.extract_strided_slice %184 {offsets = [0, 0, 0], sizes = [2, 8, 16], strides = [1, 1, 1]} : vector<4x8x16xf32> to vector<2x8x16xf32>
    %186 = vector.shape_cast %185 : vector<2x8x16xf32> to vector<16x16xf32>
    %187 = vector.extract_strided_slice %184 {offsets = [2, 0, 0], sizes = [2, 8, 16], strides = [1, 1, 1]} : vector<4x8x16xf32> to vector<2x8x16xf32>
    %188 = vector.shape_cast %187 : vector<2x8x16xf32> to vector<16x16xf32>
    %189 = tpu.concatenate %186, %188 in 1 : vector<16x16xf32>, vector<16x16xf32> -> vector<16x32xf32>
    %190 = arith.truncf %189 : vector<16x32xf32> to vector<16x32xbf16>
    %c1_53 = arith.constant 1 : index
    %c0_54 = arith.constant 0 : index
    %c0_55 = arith.constant 0 : index
    %191 = vector.load %arg5[%c1_53, %c0_54, %c0_55] : memref<2x32x32xbf16, #tpu.memory_space<vmem>>, vector<1x32x32xbf16>
    %192 = vector.shape_cast %191 : vector<1x32x32xbf16> to vector<32x32xbf16>
    %cst_56 = arith.constant dense<0.000000e+00> : vector<16x32xf32>
    %193 = tpu.matmul %190, %192, %cst_56 {dimension_numbers = #tpu.dot_dimension_numbers<[1], [0], [0], [1], [0, 0, 1, 1], [], []>} : vector<16x32xbf16>, vector<32x32xbf16>, vector<16x32xf32> -> vector<16x32xf32>
    %194 = vector.extract_strided_slice %0 {offsets = [11, 0], sizes = [1, 32], strides = [1, 1]} : vector<23x128xf32> to vector<1x32xf32>
    %195 = vector.broadcast %194 : vector<1x32xf32> to vector<16x32xf32>
    %196 = arith.addf %193, %195 : vector<16x32xf32>
    %197 = arith.addf %150, %196 : vector<16x32xf32>
    %198 = vector.extract_strided_slice %0 {offsets = [12, 0], sizes = [1, 32], strides = [1, 1]} : vector<23x128xf32> to vector<1x32xf32>
    %199 = vector.extract_strided_slice %0 {offsets = [13, 0], sizes = [1, 32], strides = [1, 1]} : vector<23x128xf32> to vector<1x32xf32>
    %cst_57 = arith.constant dense<0.000000e+00> : vector<16xf32>
    %200 = vector.multi_reduction <add>, %197, %cst_57 [1] : vector<16x32xf32> to vector<16xf32>
    %201 = vector.shape_cast %200 : vector<16xf32> to vector<16x1xf32>
    %cst_58 = arith.constant 3.200000e+01 : f32
    %202 = vector.broadcast %cst_58 : f32 to vector<16x1xf32>
    %203 = arith.divf %201, %202 : vector<16x1xf32>
    %204 = vector.broadcast %203 : vector<16x1xf32> to vector<16x32xf32>
    %205 = arith.subf %197, %204 : vector<16x32xf32>
    %206 = arith.mulf %205, %205 : vector<16x32xf32>
    %cst_59 = arith.constant dense<0.000000e+00> : vector<16xf32>
    %207 = vector.multi_reduction <add>, %206, %cst_59 [1] : vector<16x32xf32> to vector<16xf32>
    %208 = vector.shape_cast %207 : vector<16xf32> to vector<16x1xf32>
    %cst_60 = arith.constant 3.200000e+01 : f32
    %209 = vector.broadcast %cst_60 : f32 to vector<16x1xf32>
    %210 = arith.divf %208, %209 : vector<16x1xf32>
    %211 = vector.broadcast %203 : vector<16x1xf32> to vector<16x32xf32>
    %212 = arith.subf %197, %211 : vector<16x32xf32>
    %cst_61 = arith.constant 9.99999996E-13 : f32
    %213 = vector.broadcast %cst_61 : f32 to vector<16x1xf32>
    %214 = arith.addf %210, %213 : vector<16x1xf32>
    %215 = math.rsqrt %214 : vector<16x1xf32>
    %216 = vector.broadcast %215 : vector<16x1xf32> to vector<16x32xf32>
    %217 = arith.mulf %212, %216 : vector<16x32xf32>
    %218 = vector.broadcast %198 : vector<1x32xf32> to vector<16x32xf32>
    %219 = arith.mulf %217, %218 : vector<16x32xf32>
    %220 = vector.broadcast %199 : vector<1x32xf32> to vector<16x32xf32>
    %221 = arith.addf %219, %220 : vector<16x32xf32>
    %222 = arith.truncf %221 : vector<16x32xf32> to vector<16x32xbf16>
    %c1_62 = arith.constant 1 : index
    %c0_63 = arith.constant 0 : index
    %c0_64 = arith.constant 0 : index
    %223 = vector.load %arg6[%c1_62, %c0_63, %c0_64] : memref<2x32x64xbf16, #tpu.memory_space<vmem>>, vector<1x32x64xbf16>
    %224 = vector.shape_cast %223 : vector<1x32x64xbf16> to vector<32x64xbf16>
    %cst_65 = arith.constant dense<0.000000e+00> : vector<16x64xf32>
    %225 = tpu.matmul %222, %224, %cst_65 {dimension_numbers = #tpu.dot_dimension_numbers<[1], [0], [0], [1], [0, 0, 1, 1], [], []>} : vector<16x32xbf16>, vector<32x64xbf16>, vector<16x64xf32> -> vector<16x64xf32>
    %226 = vector.extract_strided_slice %0 {offsets = [14, 0], sizes = [1, 64], strides = [1, 1]} : vector<23x128xf32> to vector<1x64xf32>
    %227 = vector.broadcast %226 : vector<1x64xf32> to vector<16x64xf32>
    %228 = arith.addf %225, %227 : vector<16x64xf32>
    %cst_66 = arith.constant 5.000000e-01 : f32
    %229 = vector.broadcast %cst_66 : f32 to vector<16x64xf32>
    %230 = arith.mulf %229, %228 : vector<16x64xf32>
    %cst_67 = arith.constant 4.471500e-02 : f32
    %231 = vector.broadcast %cst_67 : f32 to vector<16x64xf32>
    %232 = arith.mulf %231, %228 : vector<16x64xf32>
    %233 = arith.mulf %232, %228 : vector<16x64xf32>
    %234 = arith.mulf %233, %228 : vector<16x64xf32>
    %235 = arith.addf %228, %234 : vector<16x64xf32>
    %cst_68 = arith.constant 0.797884583 : f32
    %236 = vector.broadcast %cst_68 : f32 to vector<16x64xf32>
    %237 = arith.mulf %236, %235 : vector<16x64xf32>
    %238 = math.tanh %237 : vector<16x64xf32>
    %cst_69 = arith.constant 1.000000e+00 : f32
    %239 = vector.broadcast %cst_69 : f32 to vector<16x64xf32>
    %240 = arith.addf %239, %238 : vector<16x64xf32>
    %241 = arith.mulf %230, %240 : vector<16x64xf32>
    %242 = arith.truncf %241 : vector<16x64xf32> to vector<16x64xbf16>
    %c1_70 = arith.constant 1 : index
    %c0_71 = arith.constant 0 : index
    %c0_72 = arith.constant 0 : index
    %243 = vector.load %arg7[%c1_70, %c0_71, %c0_72] : memref<2x64x32xbf16, #tpu.memory_space<vmem>>, vector<1x64x32xbf16>
    %244 = vector.shape_cast %243 : vector<1x64x32xbf16> to vector<64x32xbf16>
    %cst_73 = arith.constant dense<0.000000e+00> : vector<16x32xf32>
    %245 = tpu.matmul %242, %244, %cst_73 {dimension_numbers = #tpu.dot_dimension_numbers<[1], [0], [0], [1], [0, 0, 1, 1], [], []>} : vector<16x64xbf16>, vector<64x32xbf16>, vector<16x32xf32> -> vector<16x32xf32>
    %246 = vector.extract_strided_slice %0 {offsets = [15, 0], sizes = [1, 32], strides = [1, 1]} : vector<23x128xf32> to vector<1x32xf32>
    %247 = vector.broadcast %246 : vector<1x32xf32> to vector<16x32xf32>
    %248 = arith.addf %245, %247 : vector<16x32xf32>
    %249 = arith.addf %221, %248 : vector<16x32xf32>
    %250 = vector.extract_strided_slice %0 {offsets = [16, 0], sizes = [1, 32], strides = [1, 1]} : vector<23x128xf32> to vector<1x32xf32>
    %251 = vector.extract_strided_slice %0 {offsets = [17, 0], sizes = [1, 32], strides = [1, 1]} : vector<23x128xf32> to vector<1x32xf32>
    %cst_74 = arith.constant dense<0.000000e+00> : vector<16xf32>
    %252 = vector.multi_reduction <add>, %249, %cst_74 [1] : vector<16x32xf32> to vector<16xf32>
    %253 = vector.shape_cast %252 : vector<16xf32> to vector<16x1xf32>
    %cst_75 = arith.constant 3.200000e+01 : f32
    %254 = vector.broadcast %cst_75 : f32 to vector<16x1xf32>
    %255 = arith.divf %253, %254 : vector<16x1xf32>
    %256 = vector.broadcast %255 : vector<16x1xf32> to vector<16x32xf32>
    %257 = arith.subf %249, %256 : vector<16x32xf32>
    %258 = arith.mulf %257, %257 : vector<16x32xf32>
    %cst_76 = arith.constant dense<0.000000e+00> : vector<16xf32>
    %259 = vector.multi_reduction <add>, %258, %cst_76 [1] : vector<16x32xf32> to vector<16xf32>
    %260 = vector.shape_cast %259 : vector<16xf32> to vector<16x1xf32>
    %cst_77 = arith.constant 3.200000e+01 : f32
    %261 = vector.broadcast %cst_77 : f32 to vector<16x1xf32>
    %262 = arith.divf %260, %261 : vector<16x1xf32>
    %263 = vector.broadcast %255 : vector<16x1xf32> to vector<16x32xf32>
    %264 = arith.subf %249, %263 : vector<16x32xf32>
    %cst_78 = arith.constant 9.99999996E-13 : f32
    %265 = vector.broadcast %cst_78 : f32 to vector<16x1xf32>
    %266 = arith.addf %262, %265 : vector<16x1xf32>
    %267 = math.rsqrt %266 : vector<16x1xf32>
    %268 = vector.broadcast %267 : vector<16x1xf32> to vector<16x32xf32>
    %269 = arith.mulf %264, %268 : vector<16x32xf32>
    %270 = vector.broadcast %250 : vector<1x32xf32> to vector<16x32xf32>
    %271 = arith.mulf %269, %270 : vector<16x32xf32>
    %272 = vector.broadcast %251 : vector<1x32xf32> to vector<16x32xf32>
    %273 = arith.addf %271, %272 : vector<16x32xf32>
    %274 = arith.truncf %273 : vector<16x32xf32> to vector<16x32xbf16>
    %c0_79 = arith.constant 0 : index
    %c0_80 = arith.constant 0 : index
    %275 = vector.load %arg8[%c0_79, %c0_80] : memref<32x256xbf16, #tpu.memory_space<vmem>>, vector<32x128xbf16>
    %cst_81 = arith.constant dense<0.000000e+00> : vector<16x128xf32>
    %276 = tpu.matmul %274, %275, %cst_81 {dimension_numbers = #tpu.dot_dimension_numbers<[1], [0], [0], [1], [0, 0, 1, 1], [], []>} : vector<16x32xbf16>, vector<32x128xbf16>, vector<16x128xf32> -> vector<16x128xf32>
    %277 = vector.extract_strided_slice %0 {offsets = [18, 0], sizes = [1, 128], strides = [1, 1]} : vector<23x128xf32> to vector<1x128xf32>
    %278 = vector.broadcast %277 : vector<1x128xf32> to vector<16x128xf32>
    %279 = arith.addf %276, %278 : vector<16x128xf32>
    %280 = arith.negf %279 : vector<16x128xf32>
    %281 = math.exp %280 : vector<16x128xf32>
    %cst_82 = arith.constant 1.000000e+00 : f32
    %282 = vector.broadcast %cst_82 : f32 to vector<16x128xf32>
    %283 = arith.addf %282, %281 : vector<16x128xf32>
    %284 = arith.divf %282, %283 : vector<16x128xf32>
    %c0_83 = arith.constant 0 : index
    %c0_84 = arith.constant 0 : index
    %285 = vector.load %arg9[%c0_83, %c0_84] : memref<16x128xf32, #tpu.memory_space<vmem>>, vector<16x128xf32>
    tpu.vector_store %arg9[%c0_83, %c0_84], %284 {strides = array<i32>} : memref<16x128xf32, #tpu.memory_space<vmem>>, vector<16x128xf32>,
    %c0_85 = arith.constant 0 : index
    %c0_86 = arith.constant 0 : index
    %286 = vector.load %arg2[%c0_85, %c0_86] : memref<2x2xf32, #tpu.memory_space<vmem>>, vector<2x2xf32>
    %287 = vector.extract_strided_slice %286 {offsets = [0, 0], sizes = [2, 1], strides = [1, 1]} : vector<2x2xf32> to vector<2x1xf32>
    %288 = vector.extract_strided_slice %0 {offsets = [20, 0], sizes = [1, 32], strides = [1, 1]} : vector<23x128xf32> to vector<1x32xf32>
    %289 = vector.broadcast %287 : vector<2x1xf32> to vector<2x32xf32>
    %290 = vector.broadcast %288 : vector<1x32xf32> to vector<2x32xf32>
    %291 = arith.mulf %289, %290 : vector<2x32xf32>
    %292 = vector.extract_strided_slice %286 {offsets = [0, 1], sizes = [2, 1], strides = [1, 1]} : vector<2x2xf32> to vector<2x1xf32>
    %293 = vector.extract_strided_slice %0 {offsets = [21, 0], sizes = [1, 32], strides = [1, 1]} : vector<23x128xf32> to vector<1x32xf32>
    %294 = vector.broadcast %292 : vector<2x1xf32> to vector<2x32xf32>
    %295 = vector.broadcast %293 : vector<1x32xf32> to vector<2x32xf32>
    %296 = arith.mulf %294, %295 : vector<2x32xf32>
    %297 = arith.addf %291, %296 : vector<2x32xf32>
    %298 = vector.extract_strided_slice %0 {offsets = [22, 0], sizes = [1, 32], strides = [1, 1]} : vector<23x128xf32> to vector<1x32xf32>
    %299 = vector.broadcast %298 : vector<1x32xf32> to vector<2x32xf32>
    %300 = arith.addf %297, %299 : vector<2x32xf32>
    %301 = vector.shape_cast %273 : vector<16x32xf32> to vector<2x8x32xf32>
    %302 = vector.shape_cast %300 : vector<2x32xf32> to vector<2x1x32xf32>
    %303 = vector.broadcast %302 : vector<2x1x32xf32> to vector<2x8x32xf32>
    %304 = arith.addf %301, %303 : vector<2x8x32xf32>
    %305 = vector.shape_cast %304 : vector<2x8x32xf32> to vector<16x32xf32>
    %306 = arith.truncf %305 : vector<16x32xf32> to vector<16x32xbf16>
    %c0_87 = arith.constant 0 : index
    %c128 = arith.constant 128 : index
    %307 = vector.load %arg8[%c0_87, %c128] : memref<32x256xbf16, #tpu.memory_space<vmem>>, vector<32x128xbf16>
    %cst_88 = arith.constant dense<0.000000e+00> : vector<16x128xf32>
    %308 = tpu.matmul %306, %307, %cst_88 {dimension_numbers = #tpu.dot_dimension_numbers<[1], [0], [0], [1], [0, 0, 1, 1], [], []>} : vector<16x32xbf16>, vector<32x128xbf16>, vector<16x128xf32> -> vector<16x128xf32>
    %309 = vector.extract_strided_slice %0 {offsets = [19, 0], sizes = [1, 128], strides = [1, 1]} : vector<23x128xf32> to vector<1x128xf32>
    %310 = vector.broadcast %309 : vector<1x128xf32> to vector<16x128xf32>
    %311 = arith.addf %308, %310 : vector<16x128xf32>
    %312 = arith.negf %311 : vector<16x128xf32>
    %313 = math.exp %312 : vector<16x128xf32>
    %cst_89 = arith.constant 1.000000e+00 : f32
    %314 = vector.broadcast %cst_89 : f32 to vector<16x128xf32>
    %315 = arith.addf %314, %313 : vector<16x128xf32>
    %316 = arith.divf %314, %315 : vector<16x128xf32>
    %317 = arith.mulf %316, %316 : vector<16x128xf32>
    %318 = arith.mulf %317, %317 : vector<16x128xf32>
    %c0_90 = arith.constant 0 : index
    %c0_91 = arith.constant 0 : index
    %319 = vector.load %arg10[%c0_90, %c0_91] : memref<16x128xf32, #tpu.memory_space<vmem>>, vector<16x128xf32>
    tpu.vector_store %arg10[%c0_90, %c0_91], %318 {strides = array<i32>} : memref<16x128xf32, #tpu.memory_space<vmem>>, vector<16x128xf32>,
    return
  }
}

</mosaic_0001>

<llo_original>
// kernel: object_model_forward.1
$region0: #{object_model_forward.1}
  #allocation0 [shape = 'u32[]', space=smem, size = 0x4, offset = 0x4, fixed_abs, tag = 'smem constant byte address 0x4 - core index']
  #allocation1 [shape = 'u32[72,128]{1,0:T(1,128)}', space=vmem, size = 0x9000, scoped, tag = 'internal scratch']
  %s0 = inlined_call_operand.vmem [shape: f32[16,32], index: 0, kind: input, shape index: {}]
  %s1 = inlined_call_operand.vmem [shape: f32[2,1,8], index: 1, kind: input, shape index: {}]
  %s2 = inlined_call_operand.vmem [shape: f32[2,2], index: 2, kind: input, shape index: {}]
  %s3 = inlined_call_operand.vmem [shape: f32[23,128], index: 3, kind: input, shape index: {}]
  %s4 = inlined_call_operand.vmem [shape: bf16[2,32,96], index: 4, kind: input, shape index: {}]
  %s5 = inlined_call_operand.vmem [shape: bf16[2,32,32], index: 5, kind: input, shape index: {}]
  %s6 = inlined_call_operand.vmem [shape: bf16[2,32,64], index: 6, kind: input, shape index: {}]
  %s7 = inlined_call_operand.vmem [shape: bf16[2,64,32], index: 7, kind: input, shape index: {}]
  %s8 = inlined_call_operand.vmem [shape: bf16[32,256], index: 8, kind: input, shape index: {}]
  %s9 = inlined_call_operand.vmem [shape: f32[16,128], index: 9, kind: output, shape index: {0}]
  %s10 = inlined_call_operand.vmem [shape: f32[16,128], index: 10, kind: output, shape index: {1}]
  %11 = xla_tuple %s9, %s10
  %s12 = sld [smem:[#allocation0]]
  $region54: #{object_model_forward.1} parent=0
    _
  %s14 = ssub.s32 1, %s12
  %s15 = scalar_select 0, %s14, %s12
  // Predicated region
  $region2: #{object_model_forward.1} parent=0 // pred_check
    _
  $region3: #{object_model_forward.1} parent=0 // pred_check_branch
    %17 = sbr.rel (0) target = $region5
  $region4: #{object_model_forward.1} parent=0 // pred_region
    _
  $region5: #{object_model_forward.1} parent=0 // pred_fallthru
    _
  // Predicated region
  $region6: #{object_model_forward.1} parent=0 // pred_check
    _
  $region7: #{object_model_forward.1} parent=0 // pred_check_branch
    %19 = sbr.rel (0) target = $region9
  $region8: #{object_model_forward.1} parent=0 // pred_region
    _
  $region9: #{object_model_forward.1} parent=0 // pred_fallthru
    _
  // Predicated region
  $region10: #{object_model_forward.1} parent=0 // pred_check
    _
  $region11: #{object_model_forward.1} parent=0 // pred_check_branch
    %21 = sbr.rel (0) target = $region13
  $region12: #{object_model_forward.1} parent=0 // pred_region
    _
  $region13: #{object_model_forward.1} parent=0 // pred_fallthru
    _
  // Predicated region
  $region14: #{object_model_forward.1} parent=0 // pred_check
    _
  $region15: #{object_model_forward.1} parent=0 // pred_check_branch
    %23 = sbr.rel (0) target = $region17
  $region16: #{object_model_forward.1} parent=0 // pred_region
    _
  $region17: #{object_model_forward.1} parent=0 // pred_fallthru
    _
  // Predicated region
  $region18: #{object_model_forward.1} parent=0 // pred_check
    _
  $region19: #{object_model_forward.1} parent=0 // pred_check_branch
    %25 = sbr.rel (0) target = $region21
  $region20: #{object_model_forward.1} parent=0 // pred_region
    _
  $region21: #{object_model_forward.1} parent=0 // pred_fallthru
    _
  // Predicated region
  $region22: #{object_model_forward.1} parent=0 // pred_check
    _
  $region23: #{object_model_forward.1} parent=0 // pred_check_branch
    %27 = sbr.rel (0) target = $region25
  $region24: #{object_model_forward.1} parent=0 // pred_region
    _
  $region25: #{object_model_forward.1} parent=0 // pred_fallthru
    _
  // Predicated region
  $region26: #{object_model_forward.1} parent=0 // pred_check
    _
  $region27: #{object_model_forward.1} parent=0 // pred_check_branch
    %29 = sbr.rel (0) target = $region29
  $region28: #{object_model_forward.1} parent=0 // pred_region
    _
  $region29: #{object_model_forward.1} parent=0 // pred_fallthru
    _
  // Predicated region
  $region30: #{object_model_forward.1} parent=0 // pred_check
    _
  $region31: #{object_model_forward.1} parent=0 // pred_check_branch
    %31 = sbr.rel (0) target = $region33
  $region32: #{object_model_forward.1} parent=0 // pred_region
    _
  $region33: #{object_model_forward.1} parent=0 // pred_fallthru
    _
  // Predicated region
  $region34: #{object_model_forward.1} parent=0 // pred_check
    _
  $region35: #{object_model_forward.1} parent=0 // pred_check_branch
    %33 = sbr.rel (0) target = $region37
  $region36: #{object_model_forward.1} parent=0 // pred_region
    _
  $region37: #{object_model_forward.1} parent=0 // pred_fallthru
    _
  %v35 = vld [vmem:[%s3] sm:$0xff]
  %v36 = vld [vmem:[%s3 + $0x8] sm:$0xff]
  %v37 = vld [vmem:[%s3 + $0x10] sm:$0x7f]
  %v38 = vld [vmem:[%s0] sm:$0xff]
  %v39 = vld [vmem:[%s0 + $0x8] sm:$0xff]
  %vm40 = vcmask 261120
  %v41 = vsel %vm40, %v38, 0.0
  %42 = vadd.xlane.f32.xlu0 %v41
  %v43 = vpop.xlane.xlu0 %42
  %v44 = vsel %vm40, %v39, 0.0
  %45 = vadd.xlane.f32.xlu0 %v44
  %v46 = vpop.xlane.xlu0 %45
  %v47 = vrcp.pop 32.0
  %v48 = vmul.f32 32.0, %v47
  %v49 = vsub.f32 1.0, %v48
  %v50 = vmul.f32 %v47, %v49
  %v51 = vadd.f32 %v47, %v50
  %vm52 = vweird.f32 %v47
  %v53 = vsel %vm52, %v47, %v51
  %v54 = vmul.f32 %v43, %v53
  %v55 = vmul.f32 %v46, %v53
  %v56 = vsub.f32 %v38, %v54
  %v57 = vsub.f32 %v39, %v55
  %v58 = vmul.f32 %v56, %v56
  %v59 = vmul.f32 %v57, %v57
  %v60 = vsel %vm40, %v58, 0.0
  %61 = vadd.xlane.f32.xlu0 %v60
  %v62 = vpop.xlane.xlu0 %61
  %v63 = vsel %vm40, %v59, 0.0
  %64 = vadd.xlane.f32.xlu0 %v63
  %v65 = vpop.xlane.xlu0 %64
  %v66 = vmul.f32 %v62, %v53
  %v67 = vmul.f32 %v65, %v53
  %v68 = vadd.f32 %v66, 1e-12
  %v69 = vadd.f32 %v67, 1e-12
  %v70 = vrsqrt.pop %v68
  %v71 = vmul.f32 %v70, %v68
  %v72 = vmul.f32 %v71, %v70
  %v73 = vmul.f32 0.5, %v72
  %v74 = vsub.f32 1.5, %v73
  %v75 = vmul.f32 %v70, %v74
  %vm76 = vweird.f32 %v68
  %vm77 = vweird.f32 %v70
  %vm78 = vmor %vm76, %vm77
  %v79 = vsel %vm78, %v70, %v75
  %v80 = vrsqrt.pop %v69
  %v81 = vmul.f32 %v80, %v69
  %v82 = vmul.f32 %v81, %v80
  %v83 = vmul.f32 0.5, %v82
  %v84 = vsub.f32 1.5, %v83
  %v85 = vmul.f32 %v80, %v84
  %vm86 = vweird.f32 %v69
  %vm87 = vweird.f32 %v80
  %vm88 = vmor %vm86, %vm87
  %v89 = vsel %vm88, %v80, %v85
  %v90 = vmul.f32 %v56, %v79
  %v91 = vmul.f32 %v57, %v89
  %v92 = vperm.slane %v35, 0
  %v93 = vmul.f32 %v90, %v92
  %v94 = vmul.f32 %v91, %v92
  %v95 = vperm.slane %v35, 1
  %v96 = vadd.f32 %v93, %v95
  %v97 = vadd.f32 %v94, %v95
  %v98 = vld [vmem:[%s1] sm:$0x1]
  %v99 = vld [vmem:[%s1 + $0x1] sm:$0x1]
  %v100 = vpack.c.bf16 %v97, %v96
  %v101 = vld [vmem:[%s4] sm:$0xf]
  %v102 = vld [vmem:[%s4 + $0x4] sm:$0xf]
  %v103 = vld [vmem:[%s4 + $0x8] sm:$0xf]
  %v104 = vld [vmem:[%s4 + $0xc] sm:$0xf]
  %v105 = vperm.slane %v35, 2
  %v110 = vunpack.c.l.b16 %v101
  %v111 = vunpack.c.l.b16 %v102
  %v112 = vunpack.c.l.b16 %v103
  %v113 = vunpack.c.l.b16 %v104
  %v114 = vpack.c.b16 %v111, %v110
  %v115 = vpack.c.b16 %v113, %v112
  %v119 = vsel %vm40, %v100, 0
  %121 = vmatpush.bf16.msra.mxu0 0
  %122 = vmatpush.bf16.msra.mxu0 0
  %123 = vmatpush.bf16.msra.mxu0 0
  %124 = vmatpush.bf16.msra.mxu0 0
  %125 = vmatpush.bf16.msra.mxu0 0
  %126 = vmatpush.bf16.msra.mxu0 0
  %127 = vmatpush.bf16.msra.mxu0 %v115
  %128 = vmatpush.bf16.msra.mxu0 %v114
  %129 = vmatmul.bf16.gmra.mxu0 %v119
  %v130 = vpop.f32.mrf.mxu0
  %v131 = vadd.f32 %v105, %v130
  %v132 = vpop.f32.mrf.mxu0
  %v133 = vadd.f32 %v105, %v132
  %134 = vdwg.mxu0
  %137 = vrot.lane.b32.xlu0 %v131, 80
  %v138 = vpop.permute.xlu0 %137
  %139 = vrot.lane.b32.xlu0 %v133, 80
  %v140 = vpop.permute.xlu0 %139
  %v143 = vpack.c.bf16 %v131, %v131
  %v144 = vpack.c.bf16 %v133, %v133
  %v145 = vpack.c.bf16 %v138, %v138
  %v146 = vpack.c.bf16 %v140, %v140
  %v148 = vunpack.c.l.b16 %v143
  %v149 = vpack.c.b16 %v148, %v148
  %150 = vrot.lane.b32.xlu0 %v149, 112
  %v151 = vpop.permute.xlu0 %150
  %vm152 = vcmask 130048
  %v154 = vsel %vm152, %v143, 0
  %v157 = vsel %vm152, %v151, 0
  %159 = vmatpush.bf16.xpose.msra.mxu0 0
  %160 = vmatpush.bf16.xpose.msra.mxu0 0
  %161 = vmatpush.bf16.xpose.msra.mxu0 0
  %162 = vmatpush.bf16.xpose.msra.mxu0 0
  %163 = vmatpush.bf16.xpose.msra.mxu0 0
  %164 = vmatpush.bf16.xpose.msra.mxu0 0
  %165 = vmatpush.bf16.xpose.msra.mxu0 0
  %166 = vmatpush.bf16.xpose.msra.mxu0 %v157
  %167 = vmatmul.bf16.gmra.mxu0 %v154
  %v168 = vpop.f32.mrf.mxu0
  %v169 = vadd.f32 0.0, %v168
  %v170 = vpop.f32.mrf.mxu0
  %171 = vdwg.mxu0
  %v173 = vunpack.c.l.b16 %v144
  %v174 = vpack.c.b16 %v173, %v173
  %175 = vrot.lane.b32.xlu0 %v174, 112
  %v176 = vpop.permute.xlu0 %175
  %v178 = vsel %vm152, %v144, 0
  %v181 = vsel %vm152, %v176, 0
  %183 = vmatpush.bf16.xpose.msra.mxu0 0
  %184 = vmatpush.bf16.xpose.msra.mxu0 0
  %185 = vmatpush.bf16.xpose.msra.mxu0 0
  %186 = vmatpush.bf16.xpose.msra.mxu0 0
  %187 = vmatpush.bf16.xpose.msra.mxu0 0
  %188 = vmatpush.bf16.xpose.msra.mxu0 0
  %189 = vmatpush.bf16.xpose.msra.mxu0 0
  %190 = vmatpush.bf16.xpose.msra.mxu0 %v181
  %191 = vmatmul.bf16.gmra.mxu0 %v178
  %v192 = vpop.f32.mrf.mxu0
  %v193 = vadd.f32 0.0, %v192
  %v194 = vpop.f32.mrf.mxu0
  %195 = vdwg.mxu0
  %v197 = vunpack.c.l.b16 %v145
  %v198 = vpack.c.b16 %v197, %v197
  %199 = vrot.lane.b32.xlu0 %v198, 112
  %v200 = vpop.permute.xlu0 %199
  %v202 = vsel %vm152, %v145, 0
  %v205 = vsel %vm152, %v200, 0
  %207 = vmatpush.bf16.xpose.msra.mxu0 0
  %208 = vmatpush.bf16.xpose.msra.mxu0 0
  %209 = vmatpush.bf16.xpose.msra.mxu0 0
  %210 = vmatpush.bf16.xpose.msra.mxu0 0
  %211 = vmatpush.bf16.xpose.msra.mxu0 0
  %212 = vmatpush.bf16.xpose.msra.mxu0 0
  %213 = vmatpush.bf16.xpose.msra.mxu0 0
  %214 = vmatpush.bf16.xpose.msra.mxu0 %v205
  %215 = vmatmul.bf16.gmra.mxu0 %v202
  %v216 = vpop.f32.mrf.mxu0
  %v217 = vadd.f32 0.0, %v216
  %v218 = vpop.f32.mrf.mxu0
  %219 = vdwg.mxu0
  %v221 = vunpack.c.l.b16 %v146
  %v222 = vpack.c.b16 %v221, %v221
  %223 = vrot.lane.b32.xlu0 %v222, 112
  %v224 = vpop.permute.xlu0 %223
  %v226 = vsel %vm152, %v146, 0
  %v229 = vsel %vm152, %v224, 0
  %231 = vmatpush.bf16.xpose.msra.mxu0 0
  %232 = vmatpush.bf16.xpose.msra.mxu0 0
  %233 = vmatpush.bf16.xpose.msra.mxu0 0
  %234 = vmatpush.bf16.xpose.msra.mxu0 0
  %235 = vmatpush.bf16.xpose.msra.mxu0 0
  %236 = vmatpush.bf16.xpose.msra.mxu0 0
  %237 = vmatpush.bf16.xpose.msra.mxu0 0
  %238 = vmatpush.bf16.xpose.msra.mxu0 %v229
  %239 = vmatmul.bf16.gmra.mxu0 %v226
  %v240 = vpop.f32.mrf.mxu0
  %v241 = vadd.f32 0.0, %v240
  %v242 = vpop.f32.mrf.mxu0
  %243 = vdwg.mxu0
  %v244 = vmul.f32 %v169, 0.25
  %v245 = vmul.f32 %v193, 0.25
  %v246 = vmul.f32 %v217, 0.25
  %v247 = vmul.f32 %v241, 0.25
  %v250 = vperm.slane %v98, 0
  %v251 = vperm.slane %v99, 0
  %v254 = vadd.f32 %v244, %v250
  %v255 = vadd.f32 %v245, %v251
  %v256 = vadd.f32 %v246, %v250
  %v257 = vadd.f32 %v247, %v251
  %vm258 = vcmask 64512
  %v259 = vsel %vm258, %v254, -inf
  %260 = vmax.xlane.f32.xlu0 %v259
  %v261 = vpop.xlane.xlu0 %260
  %v262 = vsel %vm258, %v255, -inf
  %263 = vmax.xlane.f32.xlu0 %v262
  %v264 = vpop.xlane.xlu0 %263
  %v265 = vsel %vm258, %v256, -inf
  %266 = vmax.xlane.f32.xlu0 %v265
  %v267 = vpop.xlane.xlu0 %266
  %v268 = vsel %vm258, %v257, -inf
  %269 = vmax.xlane.f32.xlu0 %v268
  %v270 = vpop.xlane.xlu0 %269
  %v271 = vsub.f32 %v254, %v261
  %v272 = vsub.f32 %v255, %v264
  %v273 = vsub.f32 %v256, %v267
  %v274 = vsub.f32 %v257, %v270
  %v275 = vmul.f32 %v271, 1.442695
  %v276 = vpow.pop %v275
  %v277 = vmul.f32 %v272, 1.442695
  %v278 = vpow.pop %v277
  %v279 = vmul.f32 %v273, 1.442695
  %v280 = vpow.pop %v279
  %v281 = vmul.f32 %v274, 1.442695
  %v282 = vpow.pop %v281
  %v283 = vsel %vm258, %v276, 0.0
  %284 = vadd.xlane.f32.xlu0 %v283
  %v285 = vpop.xlane.xlu0 %284
  %v286 = vsel %vm258, %v278, 0.0
  %287 = vadd.xlane.f32.xlu0 %v286
  %v288 = vpop.xlane.xlu0 %287
  %v289 = vsel %vm258, %v280, 0.0
  %290 = vadd.xlane.f32.xlu0 %v289
  %v291 = vpop.xlane.xlu0 %290
  %v292 = vsel %vm258, %v282, 0.0
  %293 = vadd.xlane.f32.xlu0 %v292
  %v294 = vpop.xlane.xlu0 %293
  %v295 = vrcp.pop %v285
  %v296 = vmul.f32 %v285, %v295
  %v297 = vsub.f32 1.0, %v296
  %v298 = vmul.f32 %v295, %v297
  %v299 = vadd.f32 %v295, %v298
  %vm300 = vweird.f32 %v285
  %vm301 = vweird.f32 %v295
  %vm302 = vmor %vm300, %vm301
  %v303 = vsel %vm302, %v295, %v299
  %v304 = vand.u32 2147483647, %v285
  %vm305 = vcmp.eq.f32.partialorder %v304, 8.507059e+37
  %v306 = vand.u32 %v285, 2147483648
  %v307 = vor.u32 1.1754944e-38, %v306
  %v308 = vsel %vm305, %v307, %v303
  %v309 = vmul.f32 %v276, %v308
  %v310 = vrcp.pop %v288
  %v311 = vmul.f32 %v288, %v310
  %v312 = vsub.f32 1.0, %v311
  %v313 = vmul.f32 %v310, %v312
  %v314 = vadd.f32 %v310, %v313
  %vm315 = vweird.f32 %v288
  %vm316 = vweird.f32 %v310
  %vm317 = vmor %vm315, %vm316
  %v318 = vsel %vm317, %v310, %v314
  %v319 = vand.u32 2147483647, %v288
  %vm320 = vcmp.eq.f32.partialorder %v319, 8.507059e+37
  %v321 = vand.u32 %v288, 2147483648
  %v322 = vor.u32 1.1754944e-38, %v321
  %v323 = vsel %vm320, %v322, %v318
  %v324 = vmul.f32 %v278, %v323
  %v325 = vrcp.pop %v291
  %v326 = vmul.f32 %v291, %v325
  %v327 = vsub.f32 1.0, %v326
  %v328 = vmul.f32 %v325, %v327
  %v329 = vadd.f32 %v325, %v328
  %vm330 = vweird.f32 %v291
  %vm331 = vweird.f32 %v325
  %vm332 = vmor %vm330, %vm331
  %v333 = vsel %vm332, %v325, %v329
  %v334 = vand.u32 2147483647, %v291
  %vm335 = vcmp.eq.f32.partialorder %v334, 8.507059e+37
  %v336 = vand.u32 %v291, 2147483648
  %v337 = vor.u32 1.1754944e-38, %v336
  %v338 = vsel %vm335, %v337, %v333
  %v339 = vmul.f32 %v280, %v338
  %v340 = vrcp.pop %v294
  %v341 = vmul.f32 %v294, %v340
  %v342 = vsub.f32 1.0, %v341
  %v343 = vmul.f32 %v340, %v342
  %v344 = vadd.f32 %v340, %v343
  %vm345 = vweird.f32 %v294
  %vm346 = vweird.f32 %v340
  %vm347 = vmor %vm345, %vm346
  %v348 = vsel %vm347, %v340, %v344
  %v349 = vand.u32 2147483647, %v294
  %vm350 = vcmp.eq.f32.partialorder %v349, 8.507059e+37
  %v351 = vand.u32 %v294, 2147483648
  %v352 = vor.u32 1.1754944e-38, %v351
  %v353 = vsel %vm350, %v352, %v348
  %v354 = vmul.f32 %v282, %v353
  %v355 = vpack.c.bf16 %v309, %v309
  %v356 = vpack.c.bf16 %v324, %v324
  %v357 = vpack.c.bf16 %v339, %v339
  %v358 = vpack.c.bf16 %v354, %v354
  %359 = vrot.lane.b32.xlu0 %v149, 96
  %v360 = vpop.permute.xlu0 %359
  %v362 = vsel %vm258, %v355, 0
  %vm364 = vcmask 1043456
  %v366 = vsel %vm364, %v360, 0
  %368 = vmatpush.bf16.msra.mxu0 0
  %369 = vmatpush.bf16.msra.mxu0 0
  %370 = vmatpush.bf16.msra.mxu0 0
  %371 = vmatpush.bf16.msra.mxu0 0
  %372 = vmatpush.bf16.msra.mxu0 0
  %373 = vmatpush.bf16.msra.mxu0 0
  %374 = vmatpush.bf16.msra.mxu0 0
  %375 = vmatpush.bf16.msra.mxu0 %v366
  %376 = vmatmul.bf16.gmra.mxu0 %v362
  %v377 = vpop.f32.mrf.mxu0
  %v378 = vadd.f32 0.0, %v377
  %v379 = vpop.f32.mrf.mxu0
  %380 = vdwg.mxu0
  %381 = vrot.lane.b32.xlu0 %v174, 96
  %v382 = vpop.permute.xlu0 %381
  %v384 = vsel %vm258, %v356, 0
  %v387 = vsel %vm364, %v382, 0
  %389 = vmatpush.bf16.msra.mxu0 0
  %390 = vmatpush.bf16.msra.mxu0 0
  %391 = vmatpush.bf16.msra.mxu0 0
  %392 = vmatpush.bf16.msra.mxu0 0
  %393 = vmatpush.bf16.msra.mxu0 0
  %394 = vmatpush.bf16.msra.mxu0 0
  %395 = vmatpush.bf16.msra.mxu0 0
  %396 = vmatpush.bf16.msra.mxu0 %v387
  %397 = vmatmul.bf16.gmra.mxu0 %v384
  %v398 = vpop.f32.mrf.mxu0
  %v399 = vadd.f32 0.0, %v398
  %v400 = vpop.f32.mrf.mxu0
  %401 = vdwg.mxu0
  %402 = vrot.lane.b32.xlu0 %v198, 96
  %v403 = vpop.permute.xlu0 %402
  %v405 = vsel %vm258, %v357, 0
  %v408 = vsel %vm364, %v403, 0
  %410 = vmatpush.bf16.msra.mxu0 0
  %411 = vmatpush.bf16.msra.mxu0 0
  %412 = vmatpush.bf16.msra.mxu0 0
  %413 = vmatpush.bf16.msra.mxu0 0
  %414 = vmatpush.bf16.msra.mxu0 0
  %415 = vmatpush.bf16.msra.mxu0 0
  %416 = vmatpush.bf16.msra.mxu0 0
  %417 = vmatpush.bf16.msra.mxu0 %v408
  %418 = vmatmul.bf16.gmra.mxu0 %v405
  %v419 = vpop.f32.mrf.mxu0
  %v420 = vadd.f32 0.0, %v419
  %v421 = vpop.f32.mrf.mxu0
  %422 = vdwg.mxu0
  %423 = vrot.lane.b32.xlu0 %v222, 96
  %v424 = vpop.permute.xlu0 %423
  %v426 = vsel %vm258, %v358, 0
  %v429 = vsel %vm364, %v424, 0
  %431 = vmatpush.bf16.msra.mxu0 0
  %432 = vmatpush.bf16.msra.mxu0 0
  %433 = vmatpush.bf16.msra.mxu0 0
  %434 = vmatpush.bf16.msra.mxu0 0
  %435 = vmatpush.bf16.msra.mxu0 0
  %436 = vmatpush.bf16.msra.mxu0 0
  %437 = vmatpush.bf16.msra.mxu0 0
  %438 = vmatpush.bf16.msra.mxu0 %v429
  %439 = vmatmul.bf16.gmra.mxu0 %v426
  %v440 = vpop.f32.mrf.mxu0
  %v441 = vadd.f32 0.0, %v440
  %v442 = vpop.f32.mrf.mxu0
  %443 = vdwg.mxu0
  %446 = vrot.lane.b32.xlu0 %v420, 16
  %v447 = vpop.permute.xlu0 %446
  %448 = vrot.lane.b32.xlu0 %v441, 16
  %v449 = vpop.permute.xlu0 %448
  %v452 = vsel %vm152, %v378, %v447
  %v453 = vsel %vm152, %v399, %v449
  %v454 = vpack.c.bf16 %v453, %v452
  %v455 = vld [vmem:[%s5] sm:$0xf]
  %v456 = vld [vmem:[%s5 + $0x4] sm:$0xf]
  %v457 = vld [vmem:[%s5 + $0x8] sm:$0xf]
  %v458 = vld [vmem:[%s5 + $0xc] sm:$0xf]
  %v459 = vperm.slane %v35, 3
  %v464 = vunpack.c.l.b16 %v455
  %v465 = vunpack.c.l.b16 %v456
  %v466 = vunpack.c.l.b16 %v457
  %v467 = vunpack.c.l.b16 %v458
  %v468 = vpack.c.b16 %v465, %v464
  %v469 = vpack.c.b16 %v467, %v466
  %v473 = vsel %vm40, %v454, 0
  %475 = vmatpush.bf16.msra.mxu0 0
  %476 = vmatpush.bf16.msra.mxu0 0
  %477 = vmatpush.bf16.msra.mxu0 0
  %478 = vmatpush.bf16.msra.mxu0 0
  %479 = vmatpush.bf16.msra.mxu0 0
  %480 = vmatpush.bf16.msra.mxu0 0
  %481 = vmatpush.bf16.msra.mxu0 %v469
  %482 = vmatpush.bf16.msra.mxu0 %v468
  %483 = vmatmul.bf16.gmra.mxu0 %v473
  %v484 = vpop.f32.mrf.mxu0
  %v485 = vadd.f32 %v459, %v484
  %v486 = vpop.f32.mrf.mxu0
  %v487 = vadd.f32 %v459, %v486
  %488 = vdwg.mxu0
  %v489 = vadd.f32 %v96, %v485
  %v490 = vadd.f32 %v97, %v487
  %v491 = vsel %vm40, %v489, 0.0
  %492 = vadd.xlane.f32.xlu0 %v491
  %v493 = vpop.xlane.xlu0 %492
  %v494 = vsel %vm40, %v490, 0.0
  %495 = vadd.xlane.f32.xlu0 %v494
  %v496 = vpop.xlane.xlu0 %495
  %v497 = vmul.f32 %v493, %v53
  %v498 = vmul.f32 %v496, %v53
  %v499 = vsub.f32 %v489, %v497
  %v500 = vsub.f32 %v490, %v498
  %v501 = vmul.f32 %v499, %v499
  %v502 = vmul.f32 %v500, %v500
  %v503 = vsel %vm40, %v501, 0.0
  %504 = vadd.xlane.f32.xlu0 %v503
  %v505 = vpop.xlane.xlu0 %504
  %v506 = vsel %vm40, %v502, 0.0
  %507 = vadd.xlane.f32.xlu0 %v506
  %v508 = vpop.xlane.xlu0 %507
  %v509 = vmul.f32 %v505, %v53
  %v510 = vmul.f32 %v508, %v53
  %v511 = vadd.f32 %v509, 1e-12
  %v512 = vadd.f32 %v510, 1e-12
  %v513 = vrsqrt.pop %v511
  %v514 = vmul.f32 %v513, %v511
  %v515 = vmul.f32 %v514, %v513
  %v516 = vmul.f32 0.5, %v515
  %v517 = vsub.f32 1.5, %v516
  %v518 = vmul.f32 %v513, %v517
  %vm519 = vweird.f32 %v511
  %vm520 = vweird.f32 %v513
  %vm521 = vmor %vm519, %vm520
  %v522 = vsel %vm521, %v513, %v518
  %v523 = vrsqrt.pop %v512
  %v524 = vmul.f32 %v523, %v512
  %v525 = vmul.f32 %v524, %v523
  %v526 = vmul.f32 0.5, %v525
  %v527 = vsub.f32 1.5, %v526
  %v528 = vmul.f32 %v523, %v527
  %vm529 = vweird.f32 %v512
  %vm530 = vweird.f32 %v523
  %vm531 = vmor %vm529, %vm530
  %v532 = vsel %vm531, %v523, %v528
  %v533 = vmul.f32 %v499, %v522
  %v534 = vmul.f32 %v500, %v532
  %v535 = vperm.slane %v35, 4
  %v536 = vmul.f32 %v533, %v535
  %v537 = vmul.f32 %v534, %v535
  %v538 = vperm.slane %v35, 5
  %v539 = vadd.f32 %v536, %v538
  %v540 = vadd.f32 %v537, %v538
  %v541 = vpack.c.bf16 %v540, %v539
  %v542 = vld [vmem:[%s6] sm:$0xf]
  %v543 = vld [vmem:[%s6 + $0x4] sm:$0xf]
  %v544 = vld [vmem:[%s6 + $0x8] sm:$0xf]
  %v545 = vld [vmem:[%s6 + $0xc] sm:$0xf]
  %v546 = vperm.slane %v35, 6
  %v551 = vunpack.c.l.b16 %v542
  %v552 = vunpack.c.l.b16 %v543
  %v553 = vunpack.c.l.b16 %v544
  %v554 = vunpack.c.l.b16 %v545
  %v555 = vpack.c.b16 %v552, %v551
  %v556 = vpack.c.b16 %v554, %v553
  %v560 = vsel %vm40, %v541, 0
  %562 = vmatpush.bf16.msra.mxu0 0
  %563 = vmatpush.bf16.msra.mxu0 0
  %564 = vmatpush.bf16.msra.mxu0 0
  %565 = vmatpush.bf16.msra.mxu0 0
  %566 = vmatpush.bf16.msra.mxu0 0
  %567 = vmatpush.bf16.msra.mxu0 0
  %568 = vmatpush.bf16.msra.mxu0 %v556
  %569 = vmatpush.bf16.msra.mxu0 %v555
  %570 = vmatmul.bf16.gmra.mxu0 %v560
  %v571 = vpop.f32.mrf.mxu0
  %v572 = vadd.f32 %v546, %v571
  %v573 = vpop.f32.mrf.mxu0
  %v574 = vadd.f32 %v546, %v573
  %575 = vdwg.mxu0
  %v576 = vmul.f32 %v572, 0.5
  %v577 = vmul.f32 %v574, 0.5
  %v578 = vmul.f32 %v572, 0.044715
  %v579 = vmul.f32 %v574, 0.044715
  %v580 = vmul.f32 %v578, %v572
  %v581 = vmul.f32 %v579, %v574
  %v582 = vmul.f32 %v580, %v572
  %v583 = vmul.f32 %v581, %v574
  %v584 = vadd.f32 %v572, %v582
  %v585 = vadd.f32 %v574, %v583
  %v586 = vmul.f32 %v584, 0.7978846
  %v587 = vmul.f32 %v585, 0.7978846
  %v588 = vtanh.pop %v586
  %v589 = vtanh.pop %v587
  %v590 = vadd.f32 %v588, 1.0
  %v591 = vadd.f32 %v589, 1.0
  %v592 = vmul.f32 %v576, %v590
  %v593 = vmul.f32 %v577, %v591
  %v594 = vpack.c.bf16 %v593, %v592
  %v595 = vld [vmem:[%s7] sm:$0xf]
  %v596 = vld [vmem:[%s7 + $0x4] sm:$0xf]
  %v597 = vld [vmem:[%s7 + $0x8] sm:$0xf]
  %v598 = vld [vmem:[%s7 + $0xc] sm:$0xf]
  %v599 = vld [vmem:[%s7 + $0x10] sm:$0xf]
  %v600 = vld [vmem:[%s7 + $0x14] sm:$0xf]
  %v601 = vld [vmem:[%s7 + $0x18] sm:$0xf]
  %v602 = vld [vmem:[%s7 + $0x1c] sm:$0xf]
  %v603 = vperm.slane %v35, 7
  %v612 = vunpack.c.l.b16 %v595
  %v613 = vunpack.c.l.b16 %v596
  %v614 = vunpack.c.l.b16 %v597
  %v615 = vunpack.c.l.b16 %v598
  %v616 = vunpack.c.l.b16 %v599
  %v617 = vunpack.c.l.b16 %v600
  %v618 = vunpack.c.l.b16 %v601
  %v619 = vunpack.c.l.b16 %v602
  %v620 = vpack.c.b16 %v613, %v612
  %v621 = vpack.c.b16 %v615, %v614
  %v622 = vpack.c.b16 %v617, %v616
  %v623 = vpack.c.b16 %v619, %v618
  %vm628 = vcmask 523264
  %v630 = vsel %vm628, %v594, 0
  %632 = vmatpush.bf16.msra.mxu0 0
  %633 = vmatpush.bf16.msra.mxu0 0
  %634 = vmatpush.bf16.msra.mxu0 0
  %635 = vmatpush.bf16.msra.mxu0 0
  %636 = vmatpush.bf16.msra.mxu0 %v623
  %637 = vmatpush.bf16.msra.mxu0 %v622
  %638 = vmatpush.bf16.msra.mxu0 %v621
  %639 = vmatpush.bf16.msra.mxu0 %v620
  %640 = vmatmul.bf16.gmra.mxu0 %v630
  %v641 = vpop.f32.mrf.mxu0
  %v642 = vadd.f32 %v603, %v641
  %v643 = vpop.f32.mrf.mxu0
  %v644 = vadd.f32 %v603, %v643
  %645 = vdwg.mxu0
  %v646 = vadd.f32 %v539, %v642
  %v647 = vadd.f32 %v540, %v644
  %v648 = vsel %vm40, %v646, 0.0
  %649 = vadd.xlane.f32.xlu0 %v648
  %v650 = vpop.xlane.xlu0 %649
  %v651 = vsel %vm40, %v647, 0.0
  %652 = vadd.xlane.f32.xlu0 %v651
  %v653 = vpop.xlane.xlu0 %652
  %v654 = vmul.f32 %v650, %v53
  %v655 = vmul.f32 %v653, %v53
  %v656 = vsub.f32 %v646, %v654
  %v657 = vsub.f32 %v647, %v655
  %v658 = vmul.f32 %v656, %v656
  %v659 = vmul.f32 %v657, %v657
  %v660 = vsel %vm40, %v658, 0.0
  %661 = vadd.xlane.f32.xlu0 %v660
  %v662 = vpop.xlane.xlu0 %661
  %v663 = vsel %vm40, %v659, 0.0
  %664 = vadd.xlane.f32.xlu0 %v663
  %v665 = vpop.xlane.xlu0 %664
  %v666 = vmul.f32 %v662, %v53
  %v667 = vmul.f32 %v665, %v53
  %v668 = vadd.f32 %v666, 1e-12
  %v669 = vadd.f32 %v667, 1e-12
  %v670 = vrsqrt.pop %v668
  %v671 = vmul.f32 %v670, %v668
  %v672 = vmul.f32 %v671, %v670
  %v673 = vmul.f32 0.5, %v672
  %v674 = vsub.f32 1.5, %v673
  %v675 = vmul.f32 %v670, %v674
  %vm676 = vweird.f32 %v668
  %vm677 = vweird.f32 %v670
  %vm678 = vmor %vm676, %vm677
  %v679 = vsel %vm678, %v670, %v675
  %v680 = vrsqrt.pop %v669
  %v681 = vmul.f32 %v680, %v669
  %v682 = vmul.f32 %v681, %v680
  %v683 = vmul.f32 0.5, %v682
  %v684 = vsub.f32 1.5, %v683
  %v685 = vmul.f32 %v680, %v684
  %vm686 = vweird.f32 %v669
  %vm687 = vweird.f32 %v680
  %vm688 = vmor %vm686, %vm687
  %v689 = vsel %vm688, %v680, %v685
  %v690 = vmul.f32 %v656, %v679
  %v691 = vmul.f32 %v657, %v689
  %v692 = vperm.slane %v36, 0
  %v693 = vmul.f32 %v690, %v692
  %v694 = vmul.f32 %v691, %v692
  %v695 = vperm.slane %v36, 1
  %v696 = vadd.f32 %v693, %v695
  %v697 = vadd.f32 %v694, %v695
  %v698 = vpack.c.bf16 %v697, %v696
  %s699 = scalar_lea.vmem %s4, 16
  %v700 = vld [vmem:[%s699] sm:$0xf]
  %v701 = vld [vmem:[%s699 + $0x4] sm:$0xf]
  %v702 = vld [vmem:[%s699 + $0x8] sm:$0xf]
  %v703 = vld [vmem:[%s699 + $0xc] sm:$0xf]
  %v704 = vperm.slane %v36, 2
  %v709 = vunpack.c.l.b16 %v700
  %v710 = vunpack.c.l.b16 %v701
  %v711 = vunpack.c.l.b16 %v702
  %v712 = vunpack.c.l.b16 %v703
  %v713 = vpack.c.b16 %v710, %v709
  %v714 = vpack.c.b16 %v712, %v711
  %v718 = vsel %vm40, %v698, 0
  %720 = vmatpush.bf16.msra.mxu0 0
  %721 = vmatpush.bf16.msra.mxu0 0
  %722 = vmatpush.bf16.msra.mxu0 0
  %723 = vmatpush.bf16.msra.mxu0 0
  %724 = vmatpush.bf16.msra.mxu0 0
  %725 = vmatpush.bf16.msra.mxu0 0
  %726 = vmatpush.bf16.msra.mxu0 %v714
  %727 = vmatpush.bf16.msra.mxu0 %v713
  %728 = vmatmul.bf16.gmra.mxu0 %v718
  %v729 = vpop.f32.mrf.mxu0
  %v730 = vadd.f32 %v704, %v729
  %v731 = vpop.f32.mrf.mxu0
  %v732 = vadd.f32 %v704, %v731
  %733 = vdwg.mxu0
  %736 = vrot.lane.b32.xlu0 %v730, 80
  %v737 = vpop.permute.xlu0 %736
  %738 = vrot.lane.b32.xlu0 %v732, 80
  %v739 = vpop.permute.xlu0 %738
  %v742 = vpack.c.bf16 %v730, %v730
  %v743 = vpack.c.bf16 %v732, %v732
  %v744 = vpack.c.bf16 %v737, %v737
  %v745 = vpack.c.bf16 %v739, %v739
  %v747 = vunpack.c.l.b16 %v742
  %v748 = vpack.c.b16 %v747, %v747
  %749 = vrot.lane.b32.xlu0 %v748, 112
  %v750 = vpop.permute.xlu0 %749
  %v752 = vsel %vm152, %v742, 0
  %v755 = vsel %vm152, %v750, 0
  %757 = vmatpush.bf16.xpose.msra.mxu0 0
  %758 = vmatpush.bf16.xpose.msra.mxu0 0
  %759 = vmatpush.bf16.xpose.msra.mxu0 0
  %760 = vmatpush.bf16.xpose.msra.mxu0 0
  %761 = vmatpush.bf16.xpose.msra.mxu0 0
  %762 = vmatpush.bf16.xpose.msra.mxu0 0
  %763 = vmatpush.bf16.xpose.msra.mxu0 0
  %764 = vmatpush.bf16.xpose.msra.mxu0 %v755
  %765 = vmatmul.bf16.gmra.mxu0 %v752
  %v766 = vpop.f32.mrf.mxu0
  %v767 = vadd.f32 0.0, %v766
  %v768 = vpop.f32.mrf.mxu0
  %769 = vdwg.mxu0
  %v771 = vunpack.c.l.b16 %v743
  %v772 = vpack.c.b16 %v771, %v771
  %773 = vrot.lane.b32.xlu0 %v772, 112
  %v774 = vpop.permute.xlu0 %773
  %v776 = vsel %vm152, %v743, 0
  %v779 = vsel %vm152, %v774, 0
  %781 = vmatpush.bf16.xpose.msra.mxu0 0
  %782 = vmatpush.bf16.xpose.msra.mxu0 0
  %783 = vmatpush.bf16.xpose.msra.mxu0 0
  %784 = vmatpush.bf16.xpose.msra.mxu0 0
  %785 = vmatpush.bf16.xpose.msra.mxu0 0
  %786 = vmatpush.bf16.xpose.msra.mxu0 0
  %787 = vmatpush.bf16.xpose.msra.mxu0 0
  %788 = vmatpush.bf16.xpose.msra.mxu0 %v779
  %789 = vmatmul.bf16.gmra.mxu0 %v776
  %v790 = vpop.f32.mrf.mxu0
  %v791 = vadd.f32 0.0, %v790
  %v792 = vpop.f32.mrf.mxu0
  %793 = vdwg.mxu0
  %v795 = vunpack.c.l.b16 %v744
  %v796 = vpack.c.b16 %v795, %v795
  %797 = vrot.lane.b32.xlu0 %v796, 112
  %v798 = vpop.permute.xlu0 %797
  %v800 = vsel %vm152, %v744, 0
  %v803 = vsel %vm152, %v798, 0
  %805 = vmatpush.bf16.xpose.msra.mxu0 0
  %806 = vmatpush.bf16.xpose.msra.mxu0 0
  %807 = vmatpush.bf16.xpose.msra.mxu0 0
  %808 = vmatpush.bf16.xpose.msra.mxu0 0
  %809 = vmatpush.bf16.xpose.msra.mxu0 0
  %810 = vmatpush.bf16.xpose.msra.mxu0 0
  %811 = vmatpush.bf16.xpose.msra.mxu0 0
  %812 = vmatpush.bf16.xpose.msra.mxu0 %v803
  %813 = vmatmul.bf16.gmra.mxu0 %v800
  %v814 = vpop.f32.mrf.mxu0
  %v815 = vadd.f32 0.0, %v814
  %v816 = vpop.f32.mrf.mxu0
  %817 = vdwg.mxu0
  %v819 = vunpack.c.l.b16 %v745
  %v820 = vpack.c.b16 %v819, %v819
  %821 = vrot.lane.b32.xlu0 %v820, 112
  %v822 = vpop.permute.xlu0 %821
  %v824 = vsel %vm152, %v745, 0
  %v827 = vsel %vm152, %v822, 0
  %829 = vmatpush.bf16.xpose.msra.mxu0 0
  %830 = vmatpush.bf16.xpose.msra.mxu0 0
  %831 = vmatpush.bf16.xpose.msra.mxu0 0
  %832 = vmatpush.bf16.xpose.msra.mxu0 0
  %833 = vmatpush.bf16.xpose.msra.mxu0 0
  %834 = vmatpush.bf16.xpose.msra.mxu0 0
  %835 = vmatpush.bf16.xpose.msra.mxu0 0
  %836 = vmatpush.bf16.xpose.msra.mxu0 %v827
  %837 = vmatmul.bf16.gmra.mxu0 %v824
  %v838 = vpop.f32.mrf.mxu0
  %v839 = vadd.f32 0.0, %v838
  %v840 = vpop.f32.mrf.mxu0
  %841 = vdwg.mxu0
  %v842 = vmul.f32 %v767, 0.25
  %v843 = vmul.f32 %v791, 0.25
  %v844 = vmul.f32 %v815, 0.25
  %v845 = vmul.f32 %v839, 0.25
  %v846 = vadd.f32 %v842, %v250
  %v847 = vadd.f32 %v843, %v251
  %v848 = vadd.f32 %v844, %v250
  %v849 = vadd.f32 %v845, %v251
  %v850 = vsel %vm258, %v846, -inf
  %851 = vmax.xlane.f32.xlu0 %v850
  %v852 = vpop.xlane.xlu0 %851
  %v853 = vsel %vm258, %v847, -inf
  %854 = vmax.xlane.f32.xlu0 %v853
  %v855 = vpop.xlane.xlu0 %854
  %v856 = vsel %vm258, %v848, -inf
  %857 = vmax.xlane.f32.xlu0 %v856
  %v858 = vpop.xlane.xlu0 %857
  %v859 = vsel %vm258, %v849, -inf
  %860 = vmax.xlane.f32.xlu0 %v859
  %v861 = vpop.xlane.xlu0 %860
  %v862 = vsub.f32 %v846, %v852
  %v863 = vsub.f32 %v847, %v855
  %v864 = vsub.f32 %v848, %v858
  %v865 = vsub.f32 %v849, %v861
  %v866 = vmul.f32 %v862, 1.442695
  %v867 = vpow.pop %v866
  %v868 = vmul.f32 %v863, 1.442695
  %v869 = vpow.pop %v868
  %v870 = vmul.f32 %v864, 1.442695
  %v871 = vpow.pop %v870
  %v872 = vmul.f32 %v865, 1.442695
  %v873 = vpow.pop %v872
  %v874 = vsel %vm258, %v867, 0.0
  %875 = vadd.xlane.f32.xlu0 %v874
  %v876 = vpop.xlane.xlu0 %875
  %v877 = vsel %vm258, %v869, 0.0
  %878 = vadd.xlane.f32.xlu0 %v877
  %v879 = vpop.xlane.xlu0 %878
  %v880 = vsel %vm258, %v871, 0.0
  %881 = vadd.xlane.f32.xlu0 %v880
  %v882 = vpop.xlane.xlu0 %881
  %v883 = vsel %vm258, %v873, 0.0
  %884 = vadd.xlane.f32.xlu0 %v883
  %v885 = vpop.xlane.xlu0 %884
  %v886 = vrcp.pop %v876
  %v887 = vmul.f32 %v876, %v886
  %v888 = vsub.f32 1.0, %v887
  %v889 = vmul.f32 %v886, %v888
  %v890 = vadd.f32 %v886, %v889
  %vm891 = vweird.f32 %v876
  %vm892 = vweird.f32 %v886
  %vm893 = vmor %vm891, %vm892
  %v894 = vsel %vm893, %v886, %v890
  %v895 = vand.u32 2147483647, %v876
  %vm896 = vcmp.eq.f32.partialorder %v895, 8.507059e+37
  %v897 = vand.u32 %v876, 2147483648
  %v898 = vor.u32 1.1754944e-38, %v897
  %v899 = vsel %vm896, %v898, %v894
  %v900 = vmul.f32 %v867, %v899
  %v901 = vrcp.pop %v879
  %v902 = vmul.f32 %v879, %v901
  %v903 = vsub.f32 1.0, %v902
  %v904 = vmul.f32 %v901, %v903
  %v905 = vadd.f32 %v901, %v904
  %vm906 = vweird.f32 %v879
  %vm907 = vweird.f32 %v901
  %vm908 = vmor %vm906, %vm907
  %v909 = vsel %vm908, %v901, %v905
  %v910 = vand.u32 2147483647, %v879
  %vm911 = vcmp.eq.f32.partialorder %v910, 8.507059e+37
  %v912 = vand.u32 %v879, 2147483648
  %v913 = vor.u32 1.1754944e-38, %v912
  %v914 = vsel %vm911, %v913, %v909
  %v915 = vmul.f32 %v869, %v914
  %v916 = vrcp.pop %v882
  %v917 = vmul.f32 %v882, %v916
  %v918 = vsub.f32 1.0, %v917
  %v919 = vmul.f32 %v916, %v918
  %v920 = vadd.f32 %v916, %v919
  %vm921 = vweird.f32 %v882
  %vm922 = vweird.f32 %v916
  %vm923 = vmor %vm921, %vm922
  %v924 = vsel %vm923, %v916, %v920
  %v925 = vand.u32 2147483647, %v882
  %vm926 = vcmp.eq.f32.partialorder %v925, 8.507059e+37
  %v927 = vand.u32 %v882, 2147483648
  %v928 = vor.u32 1.1754944e-38, %v927
  %v929 = vsel %vm926, %v928, %v924
  %v930 = vmul.f32 %v871, %v929
  %v931 = vrcp.pop %v885
  %v932 = vmul.f32 %v885, %v931
  %v933 = vsub.f32 1.0, %v932
  %v934 = vmul.f32 %v931, %v933
  %v935 = vadd.f32 %v931, %v934
  %vm936 = vweird.f32 %v885
  %vm937 = vweird.f32 %v931
  %vm938 = vmor %vm936, %vm937
  %v939 = vsel %vm938, %v931, %v935
  %v940 = vand.u32 2147483647, %v885
  %vm941 = vcmp.eq.f32.partialorder %v940, 8.507059e+37
  %v942 = vand.u32 %v885, 2147483648
  %v943 = vor.u32 1.1754944e-38, %v942
  %v944 = vsel %vm941, %v943, %v939
  %v945 = vmul.f32 %v873, %v944
  %v946 = vpack.c.bf16 %v900, %v900
  %v947 = vpack.c.bf16 %v915, %v915
  %v948 = vpack.c.bf16 %v930, %v930
  %v949 = vpack.c.bf16 %v945, %v945
  %950 = vrot.lane.b32.xlu0 %v748, 96
  %v951 = vpop.permute.xlu0 %950
  %v953 = vsel %vm258, %v946, 0
  %v956 = vsel %vm364, %v951, 0
  %958 = vmatpush.bf16.msra.mxu0 0
  %959 = vmatpush.bf16.msra.mxu0 0
  %960 = vmatpush.bf16.msra.mxu0 0
  %961 = vmatpush.bf16.msra.mxu0 0
  %962 = vmatpush.bf16.msra.mxu0 0
  %963 = vmatpush.bf16.msra.mxu0 0
  %964 = vmatpush.bf16.msra.mxu0 0
  %965 = vmatpush.bf16.msra.mxu0 %v956
  %966 = vmatmul.bf16.gmra.mxu0 %v953
  %v967 = vpop.f32.mrf.mxu0
  %v968 = vadd.f32 0.0, %v967
  %v969 = vpop.f32.mrf.mxu0
  %970 = vdwg.mxu0
  %971 = vrot.lane.b32.xlu0 %v772, 96
  %v972 = vpop.permute.xlu0 %971
  %v974 = vsel %vm258, %v947, 0
  %v977 = vsel %vm364, %v972, 0
  %979 = vmatpush.bf16.msra.mxu0 0
  %980 = vmatpush.bf16.msra.mxu0 0
  %981 = vmatpush.bf16.msra.mxu0 0
  %982 = vmatpush.bf16.msra.mxu0 0
  %983 = vmatpush.bf16.msra.mxu0 0
  %984 = vmatpush.bf16.msra.mxu0 0
  %985 = vmatpush.bf16.msra.mxu0 0
  %986 = vmatpush.bf16.msra.mxu0 %v977
  %987 = vmatmul.bf16.gmra.mxu0 %v974
  %v988 = vpop.f32.mrf.mxu0
  %v989 = vadd.f32 0.0, %v988
  %v990 = vpop.f32.mrf.mxu0
  %991 = vdwg.mxu0
  %992 = vrot.lane.b32.xlu0 %v796, 96
  %v993 = vpop.permute.xlu0 %992
  %v995 = vsel %vm258, %v948, 0
  %v998 = vsel %vm364, %v993, 0
  %1000 = vmatpush.bf16.msra.mxu0 0
  %1001 = vmatpush.bf16.msra.mxu0 0
  %1002 = vmatpush.bf16.msra.mxu0 0
  %1003 = vmatpush.bf16.msra.mxu0 0
  %1004 = vmatpush.bf16.msra.mxu0 0
  %1005 = vmatpush.bf16.msra.mxu0 0
  %1006 = vmatpush.bf16.msra.mxu0 0
  %1007 = vmatpush.bf16.msra.mxu0 %v998
  %1008 = vmatmul.bf16.gmra.mxu0 %v995
  %v1009 = vpop.f32.mrf.mxu0
  %v1010 = vadd.f32 0.0, %v1009
  %v1011 = vpop.f32.mrf.mxu0
  %1012 = vdwg.mxu0
  %1013 = vrot.lane.b32.xlu0 %v820, 96
  %v1014 = vpop.permute.xlu0 %1013
  %v1016 = vsel %vm258, %v949, 0
  %v1019 = vsel %vm364, %v1014, 0
  %1021 = vmatpush.bf16.msra.mxu0 0
  %1022 = vmatpush.bf16.msra.mxu0 0
  %1023 = vmatpush.bf16.msra.mxu0 0
  %1024 = vmatpush.bf16.msra.mxu0 0
  %1025 = vmatpush.bf16.msra.mxu0 0
  %1026 = vmatpush.bf16.msra.mxu0 0
  %1027 = vmatpush.bf16.msra.mxu0 0
  %1028 = vmatpush.bf16.msra.mxu0 %v1019
  %1029 = vmatmul.bf16.gmra.mxu0 %v1016
  %v1030 = vpop.f32.mrf.mxu0
  %v1031 = vadd.f32 0.0, %v1030
  %v1032 = vpop.f32.mrf.mxu0
  %1033 = vdwg.mxu0
  %1036 = vrot.lane.b32.xlu0 %v1010, 16
  %v1037 = vpop.permute.xlu0 %1036
  %1038 = vrot.lane.b32.xlu0 %v1031, 16
  %v1039 = vpop.permute.xlu0 %1038
  %v1042 = vsel %vm152, %v968, %v1037
  %v1043 = vsel %vm152, %v989, %v1039
  %v1044 = vpack.c.bf16 %v1043, %v1042
  %s1045 = scalar_lea.vmem %s5, 16
  %v1046 = vld [vmem:[%s1045] sm:$0xf]
  %v1047 = vld [vmem:[%s1045 + $0x4] sm:$0xf]
  %v1048 = vld [vmem:[%s1045 + $0x8] sm:$0xf]
  %v1049 = vld [vmem:[%s1045 + $0xc] sm:$0xf]
  %v1050 = vperm.slane %v36, 3
  %v1055 = vunpack.c.l.b16 %v1046
  %v1056 = vunpack.c.l.b16 %v1047
  %v1057 = vunpack.c.l.b16 %v1048
  %v1058 = vunpack.c.l.b16 %v1049
  %v1059 = vpack.c.b16 %v1056, %v1055
  %v1060 = vpack.c.b16 %v1058, %v1057
  %v1064 = vsel %vm40, %v1044, 0
  %1066 = vmatpush.bf16.msra.mxu0 0
  %1067 = vmatpush.bf16.msra.mxu0 0
  %1068 = vmatpush.bf16.msra.mxu0 0
  %1069 = vmatpush.bf16.msra.mxu0 0
  %1070 = vmatpush.bf16.msra.mxu0 0
  %1071 = vmatpush.bf16.msra.mxu0 0
  %1072 = vmatpush.bf16.msra.mxu0 %v1060
  %1073 = vmatpush.bf16.msra.mxu0 %v1059
  %1074 = vmatmul.bf16.gmra.mxu0 %v1064
  %v1075 = vpop.f32.mrf.mxu0
  %v1076 = vadd.f32 %v1050, %v1075
  %v1077 = vpop.f32.mrf.mxu0
  %v1078 = vadd.f32 %v1050, %v1077
  %1079 = vdwg.mxu0
  %v1080 = vadd.f32 %v696, %v1076
  %v1081 = vadd.f32 %v697, %v1078
  %v1082 = vsel %vm40, %v1080, 0.0
  %1083 = vadd.xlane.f32.xlu0 %v1082
  %v1084 = vpop.xlane.xlu0 %1083
  %v1085 = vsel %vm40, %v1081, 0.0
  %1086 = vadd.xlane.f32.xlu0 %v1085
  %v1087 = vpop.xlane.xlu0 %1086
  %v1088 = vmul.f32 %v1084, %v53
  %v1089 = vmul.f32 %v1087, %v53
  %v1090 = vsub.f32 %v1080, %v1088
  %v1091 = vsub.f32 %v1081, %v1089
  %v1092 = vmul.f32 %v1090, %v1090
  %v1093 = vmul.f32 %v1091, %v1091
  %v1094 = vsel %vm40, %v1092, 0.0
  %1095 = vadd.xlane.f32.xlu0 %v1094
  %v1096 = vpop.xlane.xlu0 %1095
  %v1097 = vsel %vm40, %v1093, 0.0
  %1098 = vadd.xlane.f32.xlu0 %v1097
  %v1099 = vpop.xlane.xlu0 %1098
  %v1100 = vmul.f32 %v1096, %v53
  %v1101 = vmul.f32 %v1099, %v53
  %v1102 = vadd.f32 %v1100, 1e-12
  %v1103 = vadd.f32 %v1101, 1e-12
  %v1104 = vrsqrt.pop %v1102
  %v1105 = vmul.f32 %v1104, %v1102
  %v1106 = vmul.f32 %v1105, %v1104
  %v1107 = vmul.f32 0.5, %v1106
  %v1108 = vsub.f32 1.5, %v1107
  %v1109 = vmul.f32 %v1104, %v1108
  %vm1110 = vweird.f32 %v1102
  %vm1111 = vweird.f32 %v1104
  %vm1112 = vmor %vm1110, %vm1111
  %v1113 = vsel %vm1112, %v1104, %v1109
  %v1114 = vrsqrt.pop %v1103
  %v1115 = vmul.f32 %v1114, %v1103
  %v1116 = vmul.f32 %v1115, %v1114
  %v1117 = vmul.f32 0.5, %v1116
  %v1118 = vsub.f32 1.5, %v1117
  %v1119 = vmul.f32 %v1114, %v1118
  %vm1120 = vweird.f32 %v1103
  %vm1121 = vweird.f32 %v1114
  %vm1122 = vmor %vm1120, %vm1121
  %v1123 = vsel %vm1122, %v1114, %v1119
  %v1124 = vmul.f32 %v1090, %v1113
  %v1125 = vmul.f32 %v1091, %v1123
  %v1126 = vperm.slane %v36, 4
  %v1127 = vmul.f32 %v1124, %v1126
  %v1128 = vmul.f32 %v1125, %v1126
  %v1129 = vperm.slane %v36, 5
  %v1130 = vadd.f32 %v1127, %v1129
  %v1131 = vadd.f32 %v1128, %v1129
  %v1132 = vpack.c.bf16 %v1131, %v1130
  %s1133 = scalar_lea.vmem %s6, 16
  %v1134 = vld [vmem:[%s1133] sm:$0xf]
  %v1135 = vld [vmem:[%s1133 + $0x4] sm:$0xf]
  %v1136 = vld [vmem:[%s1133 + $0x8] sm:$0xf]
  %v1137 = vld [vmem:[%s1133 + $0xc] sm:$0xf]
  %v1138 = vperm.slane %v36, 6
  %v1143 = vunpack.c.l.b16 %v1134
  %v1144 = vunpack.c.l.b16 %v1135
  %v1145 = vunpack.c.l.b16 %v1136
  %v1146 = vunpack.c.l.b16 %v1137
  %v1147 = vpack.c.b16 %v1144, %v1143
  %v1148 = vpack.c.b16 %v1146, %v1145
  %v1152 = vsel %vm40, %v1132, 0
  %1154 = vmatpush.bf16.msra.mxu0 0
  %1155 = vmatpush.bf16.msra.mxu0 0
  %1156 = vmatpush.bf16.msra.mxu0 0
  %1157 = vmatpush.bf16.msra.mxu0 0
  %1158 = vmatpush.bf16.msra.mxu0 0
  %1159 = vmatpush.bf16.msra.mxu0 0
  %1160 = vmatpush.bf16.msra.mxu0 %v1148
  %1161 = vmatpush.bf16.msra.mxu0 %v1147
  %1162 = vmatmul.bf16.gmra.mxu0 %v1152
  %v1163 = vpop.f32.mrf.mxu0
  %v1164 = vadd.f32 %v1138, %v1163
  %v1165 = vpop.f32.mrf.mxu0
  %v1166 = vadd.f32 %v1138, %v1165
  %1167 = vdwg.mxu0
  %v1168 = vmul.f32 %v1164, 0.5
  %v1169 = vmul.f32 %v1166, 0.5
  %v1170 = vmul.f32 %v1164, 0.044715
  %v1171 = vmul.f32 %v1166, 0.044715
  %v1172 = vmul.f32 %v1170, %v1164
  %v1173 = vmul.f32 %v1171, %v1166
  %v1174 = vmul.f32 %v1172, %v1164
  %v1175 = vmul.f32 %v1173, %v1166
  %v1176 = vadd.f32 %v1164, %v1174
  %v1177 = vadd.f32 %v1166, %v1175
  %v1178 = vmul.f32 %v1176, 0.7978846
  %v1179 = vmul.f32 %v1177, 0.7978846
  %v1180 = vtanh.pop %v1178
  %v1181 = vtanh.pop %v1179
  %v1182 = vadd.f32 %v1180, 1.0
  %v1183 = vadd.f32 %v1181, 1.0
  %v1184 = vmul.f32 %v1168, %v1182
  %v1185 = vmul.f32 %v1169, %v1183
  %v1186 = vpack.c.bf16 %v1185, %v1184
  %s1187 = scalar_lea.vmem %s7, 32
  %v1188 = vld [vmem:[%s1187] sm:$0xf]
  %v1189 = vld [vmem:[%s1187 + $0x4] sm:$0xf]
  %v1190 = vld [vmem:[%s1187 + $0x8] sm:$0xf]
  %v1191 = vld [vmem:[%s1187 + $0xc] sm:$0xf]
  %v1192 = vld [vmem:[%s1187 + $0x10] sm:$0xf]
  %v1193 = vld [vmem:[%s1187 + $0x14] sm:$0xf]
  %v1194 = vld [vmem:[%s1187 + $0x18] sm:$0xf]
  %v1195 = vld [vmem:[%s1187 + $0x1c] sm:$0xf]
  %v1196 = vperm.slane %v36, 7
  %v1205 = vunpack.c.l.b16 %v1188
  %v1206 = vunpack.c.l.b16 %v1189
  %v1207 = vunpack.c.l.b16 %v1190
  %v1208 = vunpack.c.l.b16 %v1191
  %v1209 = vunpack.c.l.b16 %v1192
  %v1210 = vunpack.c.l.b16 %v1193
  %v1211 = vunpack.c.l.b16 %v1194
  %v1212 = vunpack.c.l.b16 %v1195
  %v1213 = vpack.c.b16 %v1206, %v1205
  %v1214 = vpack.c.b16 %v1208, %v1207
  %v1215 = vpack.c.b16 %v1210, %v1209
  %v1216 = vpack.c.b16 %v1212, %v1211
  %v1222 = vsel %vm628, %v1186, 0
  %1224 = vmatpush.bf16.msra.mxu0 0
  %1225 = vmatpush.bf16.msra.mxu0 0
  %1226 = vmatpush.bf16.msra.mxu0 0
  %1227 = vmatpush.bf16.msra.mxu0 0
  %1228 = vmatpush.bf16.msra.mxu0 %v1216
  %1229 = vmatpush.bf16.msra.mxu0 %v1215
  %1230 = vmatpush.bf16.msra.mxu0 %v1214
  %1231 = vmatpush.bf16.msra.mxu0 %v1213
  %1232 = vmatmul.bf16.gmra.mxu0 %v1222
  %v1233 = vpop.f32.mrf.mxu0
  %v1234 = vadd.f32 %v1196, %v1233
  %v1235 = vpop.f32.mrf.mxu0
  %v1236 = vadd.f32 %v1196, %v1235
  %1237 = vdwg.mxu0
  %v1238 = vadd.f32 %v1130, %v1234
  %v1239 = vadd.f32 %v1131, %v1236
  %v1240 = vsel %vm40, %v1238, 0.0
  %1241 = vadd.xlane.f32.xlu0 %v1240
  %v1242 = vpop.xlane.xlu0 %1241
  %v1243 = vsel %vm40, %v1239, 0.0
  %1244 = vadd.xlane.f32.xlu0 %v1243
  %v1245 = vpop.xlane.xlu0 %1244
  %v1246 = vmul.f32 %v1242, %v53
  %v1247 = vmul.f32 %v1245, %v53
  %v1248 = vsub.f32 %v1238, %v1246
  %v1249 = vsub.f32 %v1239, %v1247
  %v1250 = vmul.f32 %v1248, %v1248
  %v1251 = vmul.f32 %v1249, %v1249
  %v1252 = vsel %vm40, %v1250, 0.0
  %1253 = vadd.xlane.f32.xlu0 %v1252
  %v1254 = vpop.xlane.xlu0 %1253
  %v1255 = vsel %vm40, %v1251, 0.0
  %1256 = vadd.xlane.f32.xlu0 %v1255
  %v1257 = vpop.xlane.xlu0 %1256
  %v1258 = vmul.f32 %v1254, %v53
  %v1259 = vmul.f32 %v1257, %v53
  %v1260 = vadd.f32 %v1258, 1e-12
  %v1261 = vadd.f32 %v1259, 1e-12
  %v1262 = vrsqrt.pop %v1260
  %v1263 = vmul.f32 %v1262, %v1260
  %v1264 = vmul.f32 %v1263, %v1262
  %v1265 = vmul.f32 0.5, %v1264
  %v1266 = vsub.f32 1.5, %v1265
  %v1267 = vmul.f32 %v1262, %v1266
  %vm1268 = vweird.f32 %v1260
  %vm1269 = vweird.f32 %v1262
  %vm1270 = vmor %vm1268, %vm1269
  %v1271 = vsel %vm1270, %v1262, %v1267
  %v1272 = vrsqrt.pop %v1261
  %v1273 = vmul.f32 %v1272, %v1261
  %v1274 = vmul.f32 %v1273, %v1272
  %v1275 = vmul.f32 0.5, %v1274
  %v1276 = vsub.f32 1.5, %v1275
  %v1277 = vmul.f32 %v1272, %v1276
  %vm1278 = vweird.f32 %v1261
  %vm1279 = vweird.f32 %v1272
  %vm1280 = vmor %vm1278, %vm1279
  %v1281 = vsel %vm1280, %v1272, %v1277
  %v1282 = vmul.f32 %v1248, %v1271
  %v1283 = vmul.f32 %v1249, %v1281
  %v1284 = vperm.slane %v37, 0
  %v1285 = vmul.f32 %v1282, %v1284
  %v1286 = vmul.f32 %v1283, %v1284
  %v1287 = vperm.slane %v37, 1
  %v1288 = vadd.f32 %v1285, %v1287
  %v1289 = vadd.f32 %v1286, %v1287
  %v1290 = vpack.c.bf16 %v1289, %v1288
  %v1291 = vld [vmem:[%s8] sm:$0xf]
  %v1292 = vld [vmem:[%s8 + $0x8] sm:$0xf]
  %v1293 = vld [vmem:[%s8 + $0x10] sm:$0xf]
  %v1294 = vld [vmem:[%s8 + $0x18] sm:$0xf]
  %v1295 = vperm.slane %v37, 2
  %v1300 = vunpack.c.l.b16 %v1291
  %v1301 = vunpack.c.l.b16 %v1292
  %v1302 = vunpack.c.l.b16 %v1293
  %v1303 = vunpack.c.l.b16 %v1294
  %v1304 = vpack.c.b16 %v1301, %v1300
  %v1305 = vpack.c.b16 %v1303, %v1302
  %v1309 = vsel %vm40, %v1290, 0
  %1311 = vmatpush.bf16.msra.mxu0 0
  %1312 = vmatpush.bf16.msra.mxu0 0
  %1313 = vmatpush.bf16.msra.mxu0 0
  %1314 = vmatpush.bf16.msra.mxu0 0
  %1315 = vmatpush.bf16.msra.mxu0 0
  %1316 = vmatpush.bf16.msra.mxu0 0
  %1317 = vmatpush.bf16.msra.mxu0 %v1305
  %1318 = vmatpush.bf16.msra.mxu0 %v1304
  %1319 = vmatmul.bf16.gmra.mxu0 %v1309
  %v1320 = vpop.f32.mrf.mxu0
  %v1321 = vadd.f32 %v1295, %v1320
  %v1322 = vpop.f32.mrf.mxu0
  %v1323 = vadd.f32 %v1295, %v1322
  %1324 = vdwg.mxu0
  %v1325 = vxor.u32 %v1321, 2147483648
  %v1326 = vxor.u32 %v1323, 2147483648
  %v1327 = vmul.f32 %v1325, 1.442695
  %v1328 = vpow.pop %v1327
  %v1329 = vmul.f32 %v1326, 1.442695
  %v1330 = vpow.pop %v1329
  %v1331 = vadd.f32 %v1328, 1.0
  %v1332 = vadd.f32 %v1330, 1.0
  %v1333 = vrcp.pop %v1331
  %v1334 = vmul.f32 %v1331, %v1333
  %v1335 = vsub.f32 1.0, %v1334
  %v1336 = vmul.f32 %v1333, %v1335
  %v1337 = vadd.f32 %v1333, %v1336
  %vm1338 = vweird.f32 %v1331
  %vm1339 = vweird.f32 %v1333
  %vm1340 = vmor %vm1338, %vm1339
  %v1341 = vsel %vm1340, %v1333, %v1337
  %v1342 = vand.u32 2147483647, %v1331
  %vm1343 = vcmp.eq.f32.partialorder %v1342, 8.507059e+37
  %v1344 = vand.u32 %v1331, 2147483648
  %v1345 = vor.u32 1.1754944e-38, %v1344
  %v1346 = vsel %vm1343, %v1345, %v1341
  %v1347 = vmul.f32 1.0, %v1346
  %v1348 = vrcp.pop %v1332
  %v1349 = vmul.f32 %v1332, %v1348
  %v1350 = vsub.f32 1.0, %v1349
  %v1351 = vmul.f32 %v1348, %v1350
  %v1352 = vadd.f32 %v1348, %v1351
  %vm1353 = vweird.f32 %v1332
  %vm1354 = vweird.f32 %v1348
  %vm1355 = vmor %vm1353, %vm1354
  %v1356 = vsel %vm1355, %v1348, %v1352
  %v1357 = vand.u32 2147483647, %v1332
  %vm1358 = vcmp.eq.f32.partialorder %v1357, 8.507059e+37
  %v1359 = vand.u32 %v1332, 2147483648
  %v1360 = vor.u32 1.1754944e-38, %v1359
  %v1361 = vsel %vm1358, %v1360, %v1356
  %v1362 = vmul.f32 1.0, %v1361
  %1363 = vst [vmem:[%s9] sm:$0xff] %v1347
  %1364 = vst [vmem:[%s9 + $0x8] sm:$0xff] %v1362
  %v1365 = vld [vmem:[%s2] sm:$0x3]
  %1367 = vset.pattern.permute.xlu0 0
  %1368 = vperm.xlu0 %1367, %v1365
  %v1369 = vpop.permute.xlu0 %1368
  %v1371 = vperm.slane %v37, 4
  %v1372 = vmul.f32 %v1369, %v1371
  %1373 = vset.pattern.permute.xlu0 1
  %1374 = vperm.xlu0 %1373, %v1365
  %v1375 = vpop.permute.xlu0 %1374
  %v1377 = vperm.slane %v37, 5
  %v1378 = vmul.f32 %v1375, %v1377
  %v1379 = vadd.f32 %v1372, %v1378
  %v1380 = vperm.slane %v37, 6
  %v1381 = vadd.f32 %v1379, %v1380
  %v1383 = vrot.slane %v1381, 1
  %v1384 = vperm.slane %v1381, 0
  %v1385 = vperm.slane %v1383, 0
  %v1388 = vadd.f32 %v1288, %v1384
  %v1389 = vadd.f32 %v1289, %v1385
  %v1390 = vpack.c.bf16 %v1389, %v1388
  %v1391 = vld [vmem:[%s8 + $0x4] sm:$0xf]
  %v1392 = vld [vmem:[%s8 + $0xc] sm:$0xf]
  %v1393 = vld [vmem:[%s8 + $0x14] sm:$0xf]
  %v1394 = vld [vmem:[%s8 + $0x1c] sm:$0xf]
  %v1395 = vperm.slane %v37, 3
  %v1400 = vunpack.c.l.b16 %v1391
  %v1401 = vunpack.c.l.b16 %v1392
  %v1402 = vunpack.c.l.b16 %v1393
  %v1403 = vunpack.c.l.b16 %v1394
  %v1404 = vpack.c.b16 %v1401, %v1400
  %v1405 = vpack.c.b16 %v1403, %v1402
  %v1409 = vsel %vm40, %v1390, 0
  %1411 = vmatpush.bf16.msra.mxu0 0
  %1412 = vmatpush.bf16.msra.mxu0 0
  %1413 = vmatpush.bf16.msra.mxu0 0
  %1414 = vmatpush.bf16.msra.mxu0 0
  %1415 = vmatpush.bf16.msra.mxu0 0
  %1416 = vmatpush.bf16.msra.mxu0 0
  %1417 = vmatpush.bf16.msra.mxu0 %v1405
  %1418 = vmatpush.bf16.msra.mxu0 %v1404
  %1419 = vmatmul.bf16.gmra.mxu0 %v1409
  %v1420 = vpop.f32.mrf.mxu0
  %v1421 = vadd.f32 %v1395, %v1420
  %v1422 = vpop.f32.mrf.mxu0
  %v1423 = vadd.f32 %v1395, %v1422
  %1424 = vdwg.mxu0
  %v1425 = vxor.u32 %v1421, 2147483648
  %v1426 = vxor.u32 %v1423, 2147483648
  %v1427 = vmul.f32 %v1425, 1.442695
  %v1428 = vpow.pop %v1427
  %v1429 = vmul.f32 %v1426, 1.442695
  %v1430 = vpow.pop %v1429
  %v1431 = vadd.f32 %v1428, 1.0
  %v1432 = vadd.f32 %v1430, 1.0
  %v1433 = vrcp.pop %v1431
  %v1434 = vmul.f32 %v1431, %v1433
  %v1435 = vsub.f32 1.0, %v1434
  %v1436 = vmul.f32 %v1433, %v1435
  %v1437 = vadd.f32 %v1433, %v1436
  %vm1438 = vweird.f32 %v1431
  %vm1439 = vweird.f32 %v1433
  %vm1440 = vmor %vm1438, %vm1439
  %v1441 = vsel %vm1440, %v1433, %v1437
  %v1442 = vand.u32 2147483647, %v1431
  %vm1443 = vcmp.eq.f32.partialorder %v1442, 8.507059e+37
  %v1444 = vand.u32 %v1431, 2147483648
  %v1445 = vor.u32 1.1754944e-38, %v1444
  %v1446 = vsel %vm1443, %v1445, %v1441
  %v1447 = vmul.f32 1.0, %v1446
  %v1448 = vrcp.pop %v1432
  %v1449 = vmul.f32 %v1432, %v1448
  %v1450 = vsub.f32 1.0, %v1449
  %v1451 = vmul.f32 %v1448, %v1450
  %v1452 = vadd.f32 %v1448, %v1451
  %vm1453 = vweird.f32 %v1432
  %vm1454 = vweird.f32 %v1448
  %vm1455 = vmor %vm1453, %vm1454
  %v1456 = vsel %vm1455, %v1448, %v1452
  %v1457 = vand.u32 2147483647, %v1432
  %vm1458 = vcmp.eq.f32.partialorder %v1457, 8.507059e+37
  %v1459 = vand.u32 %v1432, 2147483648
  %v1460 = vor.u32 1.1754944e-38, %v1459
  %v1461 = vsel %vm1458, %v1460, %v1456
  %v1462 = vmul.f32 1.0, %v1461
  %v1463 = vmul.f32 %v1447, %v1447
  %v1464 = vmul.f32 %v1462, %v1462
  %v1465 = vmul.f32 %v1463, %v1463
  %v1466 = vmul.f32 %v1464, %v1464
  %1467 = vst [vmem:[%s10] sm:$0xff] %v1465
  %1468 = vst [vmem:[%s10 + $0x8] sm:$0xff] %v1466
  // Predicated region
  $region38: #{object_model_forward.1} parent=0 // pred_check
    _
  $region39: #{object_model_forward.1} parent=0 // pred_check_branch
    %1470 = sbr.rel (0) target = $region41
  $region40: #{object_model_forward.1} parent=0 // pred_region
    _
  $region41: #{object_model_forward.1} parent=0 // pred_fallthru
    _
  // Predicated region
  $region42: #{object_model_forward.1} parent=0 // pred_check
    _
  $region43: #{object_model_forward.1} parent=0 // pred_check_branch
    %1472 = sbr.rel (0) target = $region45
  $region44: #{object_model_forward.1} parent=0 // pred_region
    _
  $region45: #{object_model_forward.1} parent=0 // pred_fallthru
    _
  // Predicated region
  $region46: #{object_model_forward.1} parent=0 // pred_check
    _
  $region47: #{object_model_forward.1} parent=0 // pred_check_branch
    %1474 = sbr.rel (0) target = $region49
  $region48: #{object_model_forward.1} parent=0 // pred_region
    _
  $region49: #{object_model_forward.1} parent=0 // pred_fallthru
    _
  // Predicated region
  $region50: #{object_model_forward.1} parent=0 // pred_check
    _
  $region51: #{object_model_forward.1} parent=0 // pred_check_branch
    %1476 = sbr.rel (0) target = $region53
  $region52: #{object_model_forward.1} parent=0 // pred_region
    _
  $region53: #{object_model_forward.1} parent=0 // pred_fallthru
    _

</llo_original>
